<compile_context>
chip_gen: v6e
topology: v6e:2x2x1
jax: 0.10.0
libtpu: 0.0.40
codegen_flags: <defaults>
</compile_context>

<pallas_src>
import jax
import jax.numpy as jnp
from jax import lax
from jax.experimental import pallas as pl
from jax.experimental.pallas import tpu as pltpu

_HEAD_PAD = 128  # lane-dense output width (cols 0/1 real, rest zero padding)


def _lstm_head_kernel(
    x_ref,       # [S*B, F]   time-major, flattened (row t*B + b)
    wih1_ref,    # [F, 4H]    g-gate columns pre-scaled by 2
    whh1_ref,    # [H, 4H]    g-gate columns pre-scaled by 2
    b1_ref,      # [1, 4H]    b_ih1 + b_hh1, g-gate entries pre-scaled by 2
    wih2_ref,    # [H, 4H]    w_ih2.T, g-gate columns pre-scaled by 2
    whh2_ref,    # [H, 4H]    w_hh2.T, g-gate columns pre-scaled by 2
    b2_ref,      # [1, 4H]    b_ih2 + b_hh2, g-gate entries pre-scaled by 2
    scale_ref,   # [1, H]     BN: gamma / sqrt(running_var + eps)
    shift_ref,   # [1, H]     BN: beta - running_mean * scale
    wheads_ref,  # [H, 128]   col 0 = fc_temp.weight, col 1 = fc_humidity.weight, rest 0
    bheads_ref,  # [1, 128]   col 0 = fc_temp.bias,   col 1 = fc_humidity.bias,   rest 0
    out_ref,     # [B, 128]   col 0 = temp_pred, col 1 = humidity_pred
):
    batch = out_ref.shape[0]
    hidden = whh1_ref.shape[0]
    seq = x_ref.shape[0] // batch
    h4 = 4 * hidden

    whh1 = whh1_ref[...]
    wih2 = wih2_ref[...]
    whh2 = whh2_ref[...]

    # Hoisted layer-1 input projection for ALL timesteps in one MXU matmul,
    # with the summed (g-prescaled) bias folded in.
    xp_all = (
        jnp.dot(x_ref[...], wih1_ref[...], preferred_element_type=jnp.float32)
        + b1_ref[...]
    )                                                     # [S*B, 4H]

    # Hoisted layer-2 bias broadcast (no per-step broadcast_in_dim).
    b2b = jnp.broadcast_to(b2_ref[...], (batch, h4))      # [B, 4H]

    def cell(gates, c):
        # Single full-vreg EUP pass: the g-gate pre-activations were already
        # multiplied by 2 (folded into the weights/bias), so
        # tanh(g_pre) = 2*sigmoid(2*g_pre) - 1 is a VPU-only fixup on the slice.
        sig = jax.nn.sigmoid(gates)
        i = sig[:, 0:hidden]
        f = sig[:, hidden:2 * hidden]
        g = 2.0 * sig[:, 2 * hidden:3 * hidden] - 1.0
        o = sig[:, 3 * hidden:4 * hidden]
        c_new = f * c + i * g
        h_new = o * jnp.tanh(c_new)
        # TODO(synk): audit the bundle dump for XLU relayouts of the 32-lane gate
        # slices; if they dominate, pre-permute gate columns / keep full-tile math.
        return h_new, c_new

    zeros = jnp.zeros((batch, hidden), jnp.float32)
    h1, c1, h2, c2 = zeros, zeros, zeros, zeros

    # seq is static and tiny -> fully unrolled recurrence (LLO sees everything).
    # TODO(synk): for large seq switch to lax.fori_loop(..., unroll=4..8) and
    # stream xp_all in chunks to bound vreg/VMEM live ranges.
    for t in range(seq):
        xp_t = xp_all[t * batch:(t + 1) * batch, :]       # static slice, [B, 4H]
        gates1 = xp_t + jnp.dot(h1, whh1, preferred_element_type=jnp.float32)
        h1, c1 = cell(gates1, c1)
        # Layer 2: two small dots accumulated directly (no lane-axis concat on
        # the serial chain; on v7x both partials accumulate in the MRB).
        gates2 = (
            jnp.dot(h1, wih2, preferred_element_type=jnp.float32)
            + jnp.dot(h2, whh2, preferred_element_type=jnp.float32)
            + b2b
        )
        h2, c2 = cell(gates2, c2)

    # Eval-mode BatchNorm1d (scale/shift), then both heads as one lane-dense
    # 128-wide matmul + unmasked store; wrapper slices out the two heads.
    normalized = h2 * scale_ref[...] + shift_ref[...]
    out_ref[...] = (
        jnp.dot(normalized, wheads_ref[...], preferred_element_type=jnp.float32)
        + bheads_ref[...]
    )


def init_params(key, input_size, hidden_size):
    """Deterministic synthetic parameters matching nn.LSTM / BatchNorm1d / Linear shapes."""
    ks = jax.random.split(key, 12)
    s = 0.1

    def rnd(k, shape):
        return (s * jax.random.normal(k, shape)).astype(jnp.float32)

    params = dict(
        # layer 1 (PyTorch layout: [4H, in])
        w_ih1=rnd(ks[0], (4 * hidden_size, input_size)),
        w_hh1=rnd(ks[1], (4 * hidden_size, hidden_size)),
        b_ih1=rnd(ks[2], (4 * hidden_size,)),
        b_hh1=rnd(ks[3], (4 * hidden_size,)),
        # layer 2
        w_ih2=rnd(ks[4], (4 * hidden_size, hidden_size)),
        w_hh2=rnd(ks[5], (4 * hidden_size, hidden_size)),
        b_ih2=rnd(ks[6], (4 * hidden_size,)),
        b_hh2=rnd(ks[7], (4 * hidden_size,)),
        # BatchNorm1d (PyTorch defaults: gamma=1, beta=0, mean=0, var=1)
        bn_gamma=jnp.ones((hidden_size,), jnp.float32),
        bn_beta=jnp.zeros((hidden_size,), jnp.float32),
        bn_mean=jnp.zeros((hidden_size,), jnp.float32),
        bn_var=jnp.ones((hidden_size,), jnp.float32),
        bn_eps=1e-5,
        # heads
        w_temp=rnd(ks[8], (1, hidden_size)),
        b_temp=rnd(ks[9], (1,)),
        w_hum=rnd(ks[10], (1, hidden_size)),
        b_hum=rnd(ks[11], (1,)),
    )
    return params


def _prescale_g(mat_t, hidden):
    """Multiply the g-gate block (columns 2H:3H of a [..., 4H] tensor) by 2."""
    return mat_t.at[..., 2 * hidden:3 * hidden].multiply(2.0)


@jax.jit
def multi_output_lstm_forward(x, params):
    """x: [batch, seq, features] float32 -> (temp [batch,1], humidity [batch,1])."""
    batch, seq, feat = x.shape
    hidden = params["w_hh1"].shape[1]
    h4 = 4 * hidden

    # Glue: time-major + flatten so the layer-1 input projection is one matmul.
    # TODO(synk): at scale express this access pattern via BlockSpec index_map
    # instead of materializing a time-major copy in XLA.
    x_flat = (
        jnp.transpose(x, (1, 0, 2)).reshape(seq * batch, feat).astype(jnp.float32)
    )

    # Transposed weights with the g-gate columns pre-scaled by 2 so the kernel
    # needs a single sigmoid pass (tanh(x) = 2*sigmoid(2x) - 1).
    wih1 = _prescale_g(params["w_ih1"].T, hidden)                   # [F, 4H]
    whh1 = _prescale_g(params["w_hh1"].T, hidden)                   # [H, 4H]
    b1 = _prescale_g(params["b_ih1"] + params["b_hh1"], hidden).reshape(1, h4)
    wih2 = _prescale_g(params["w_ih2"].T, hidden)                   # [H, 4H]
    whh2 = _prescale_g(params["w_hh2"].T, hidden)                   # [H, 4H]
    b2 = _prescale_g(params["b_ih2"] + params["b_hh2"], hidden).reshape(1, h4)

    # Fold eval-mode BatchNorm1d into per-feature scale/shift.
    inv_std = 1.0 / jnp.sqrt(params["bn_var"] + params["bn_eps"])
    scale = (params["bn_gamma"] * inv_std).reshape(1, hidden)
    shift = (params["bn_beta"]
             - params["bn_mean"] * params["bn_gamma"] * inv_std).reshape(1, hidden)

    # Both heads merged into one lane-dense [H, 128] weight (cols 0/1 real, rest 0).
    wheads = jnp.zeros((hidden, _HEAD_PAD), jnp.float32)
    wheads = wheads.at[:, 0].set(params["w_temp"][0])
    wheads = wheads.at[:, 1].set(params["w_hum"][0])
    bheads = jnp.zeros((1, _HEAD_PAD), jnp.float32)
    bheads = bheads.at[0, 0].set(params["b_temp"][0])
    bheads = bheads.at[0, 1].set(params["b_hum"][0])

    flops = (
        2 * seq * batch * feat * h4                         # hoisted input projection
        + seq * (2 * batch * hidden * h4                    # h1 @ whh1 per step
                 + 2 * 2 * batch * hidden * h4)             # layer-2 two dots per step
        + 2 * batch * hidden * _HEAD_PAD                    # merged heads
    )
    # One sigmoid over [B,4H] + one tanh over [B,H] per cell, 2 cells per step.
    transcendentals = seq * 2 * (batch * h4 + batch * hidden)
    bytes_accessed = 4 * (
        seq * batch * feat + feat * h4 + 3 * hidden * h4 + 2 * h4
        + 2 * hidden + hidden * _HEAD_PAD + _HEAD_PAD + batch * _HEAD_PAD
    )

    vmem = pl.BlockSpec(memory_space=pltpu.MemorySpace.VMEM)
    out = pl.pallas_call(
        _lstm_head_kernel,
        out_shape=jax.ShapeDtypeStruct((batch, _HEAD_PAD), jnp.float32),
        in_specs=[vmem] * 11,
        out_specs=vmem,
        cost_estimate=pl.CostEstimate(
            flops=flops,
            transcendentals=transcendentals,
            bytes_accessed=bytes_accessed,
        ),
    )(x_flat, wih1, whh1, b1, wih2, whh2, b2, scale, shift, wheads, bheads)

    # TODO(synk): for non-toy batch sizes add a batch-tile grid
    # (dimension_semantics=("parallel",)) so v7x's two TensorCores split the
    # batch, set vmem_limit_bytes from the per-chip budget (v7x 64 MiB / v5e
    # 16 MiB scoped), and cast MXU operands (not the h/c state) to bf16 on
    # v6e/v7x once hidden/batch scale.
    return out[:, 0:1], out[:, 1:2]


def _reference_forward(x, params):
    """Pure-JAX reference mirroring the PyTorch eval-mode forward (for self-check)."""
    batch, seq, _ = x.shape
    hidden = params["w_hh1"].shape[1]
    hp = lax.Precision.HIGHEST

    def cell(x_t, h, c, w_ih, w_hh, b_ih, b_hh):
        gates = (jnp.dot(x_t, w_ih.T, precision=hp) + b_ih
                 + jnp.dot(h, w_hh.T, precision=hp) + b_hh)
        i = jax.nn.sigmoid(gates[:, 0:hidden])
        f = jax.nn.sigmoid(gates[:, hidden:2 * hidden])
        g = jnp.tanh(gates[:, 2 * hidden:3 * hidden])
        o = jax.nn.sigmoid(gates[:, 3 * hidden:4 * hidden])
        c_new = f * c + i * g
        return o * jnp.tanh(c_new), c_new

    z = jnp.zeros((batch, hidden), jnp.float32)
    h1, c1, h2, c2 = z, z, z, z
    for t in range(seq):
        h1, c1 = cell(x[:, t, :], h1, c1,
                      params["w_ih1"], params["w_hh1"],
                      params["b_ih1"], params["b_hh1"])
        h2, c2 = cell(h1, h2, c2,
                      params["w_ih2"], params["w_hh2"],
                      params["b_ih2"], params["b_hh2"])
    inv_std = 1.0 / jnp.sqrt(params["bn_var"] + params["bn_eps"])
    normalized = ((h2 - params["bn_mean"]) * inv_std * params["bn_gamma"]
                  + params["bn_beta"])
    temp = jnp.dot(normalized, params["w_temp"].T, precision=hp) + params["b_temp"]
    hum = jnp.dot(normalized, params["w_hum"].T, precision=hp) + params["b_hum"]
    return temp, hum


if __name__ == "__main__":
    key = jax.random.PRNGKey(0)
    k_x, k_p = jax.random.split(key)

    batch, seq, input_size, hidden_size = 8, 8, 16, 32
    x = jax.random.normal(k_x, (batch, seq, input_size), dtype=jnp.float32)
    params = init_params(k_p, input_size, hidden_size)

    temp_pred, humidity_pred = multi_output_lstm_forward(x, params)
    jax.block_until_ready((temp_pred, humidity_pred))

    assert temp_pred.shape == (batch, 1)
    assert humidity_pred.shape == (batch, 1)

    # Numerical self-check against a pure-JAX reference of the PyTorch forward.
    temp_ref, hum_ref = _reference_forward(x, params)
    assert jnp.allclose(temp_pred, temp_ref, atol=2e-3, rtol=2e-3)
    assert jnp.allclose(humidity_pred, hum_ref, atol=2e-3, rtol=2e-3)

    print("KERNEL_OK")
</pallas_src>

<mosaic_0001>
module attributes {stable_mosaic.version = 11 : i64} {
  func.func @_lstm_head_kernel(%arg0: memref<64x16xf32, #tpu.memory_space<vmem>>, %arg1: memref<16x128xf32, #tpu.memory_space<vmem>>, %arg2: memref<32x128xf32, #tpu.memory_space<vmem>>, %arg3: memref<1x128xf32, #tpu.memory_space<vmem>>, %arg4: memref<32x128xf32, #tpu.memory_space<vmem>>, %arg5: memref<32x128xf32, #tpu.memory_space<vmem>>, %arg6: memref<1x128xf32, #tpu.memory_space<vmem>>, %arg7: memref<1x32xf32, #tpu.memory_space<vmem>>, %arg8: memref<1x32xf32, #tpu.memory_space<vmem>>, %arg9: memref<32x128xf32, #tpu.memory_space<vmem>>, %arg10: memref<1x128xf32, #tpu.memory_space<vmem>>, %arg11: memref<8x128xf32, #tpu.memory_space<vmem>>) attributes {dimension_semantics = [], scalar_prefetch = 0 : i64, scratch_operands = 0 : i64, tpu.core_type = #tpu.core_type<tc>} {
    %c0 = arith.constant 0 : index
    %c0_0 = arith.constant 0 : index
    %0 = vector.load %arg2[%c0, %c0_0] : memref<32x128xf32, #tpu.memory_space<vmem>>, vector<32x128xf32>
    %c0_1 = arith.constant 0 : index
    %c0_2 = arith.constant 0 : index
    %1 = vector.load %arg4[%c0_1, %c0_2] : memref<32x128xf32, #tpu.memory_space<vmem>>, vector<32x128xf32>
    %c0_3 = arith.constant 0 : index
    %c0_4 = arith.constant 0 : index
    %2 = vector.load %arg5[%c0_3, %c0_4] : memref<32x128xf32, #tpu.memory_space<vmem>>, vector<32x128xf32>
    %c0_5 = arith.constant 0 : index
    %c0_6 = arith.constant 0 : index
    %3 = vector.load %arg0[%c0_5, %c0_6] : memref<64x16xf32, #tpu.memory_space<vmem>>, vector<64x16xf32>
    %c0_7 = arith.constant 0 : index
    %c0_8 = arith.constant 0 : index
    %4 = vector.load %arg1[%c0_7, %c0_8] : memref<16x128xf32, #tpu.memory_space<vmem>>, vector<16x128xf32>
    %cst = arith.constant dense<0.000000e+00> : vector<64x128xf32>
    %5 = tpu.matmul %3, %4, %cst {dimension_numbers = #tpu.dot_dimension_numbers<[1], [0], [0], [1], [0, 0, 1, 1], [], []>} : vector<64x16xf32>, vector<16x128xf32>, vector<64x128xf32> -> vector<64x128xf32>
    %c0_9 = arith.constant 0 : index
    %c0_10 = arith.constant 0 : index
    %6 = vector.load %arg3[%c0_9, %c0_10] : memref<1x128xf32, #tpu.memory_space<vmem>>, vector<1x128xf32>
    %7 = vector.broadcast %6 : vector<1x128xf32> to vector<64x128xf32>
    %8 = arith.addf %5, %7 : vector<64x128xf32>
    %c0_11 = arith.constant 0 : index
    %c0_12 = arith.constant 0 : index
    %9 = vector.load %arg6[%c0_11, %c0_12] : memref<1x128xf32, #tpu.memory_space<vmem>>, vector<1x128xf32>
    %10 = vector.shape_cast %9 : vector<1x128xf32> to vector<1x128xf32>
    %11 = vector.broadcast %10 : vector<1x128xf32> to vector<8x128xf32>
    %cst_13 = arith.constant 0.000000e+00 : f32
    %12 = vector.broadcast %cst_13 : f32 to vector<8x32xf32>
    %13 = vector.extract_strided_slice %8 {offsets = [0, 0], sizes = [8, 128], strides = [1, 1]} : vector<64x128xf32> to vector<8x128xf32>
    %cst_14 = arith.constant dense<0.000000e+00> : vector<8x128xf32>
    %14 = tpu.matmul %12, %0, %cst_14 {dimension_numbers = #tpu.dot_dimension_numbers<[1], [0], [0], [1], [0, 0, 1, 1], [], []>} : vector<8x32xf32>, vector<32x128xf32>, vector<8x128xf32> -> vector<8x128xf32>
    %15 = arith.addf %13, %14 : vector<8x128xf32>
    %16 = arith.negf %15 : vector<8x128xf32>
    %17 = math.exp %16 : vector<8x128xf32>
    %cst_15 = arith.constant 1.000000e+00 : f32
    %18 = vector.broadcast %cst_15 : f32 to vector<8x128xf32>
    %19 = arith.addf %18, %17 : vector<8x128xf32>
    %20 = arith.divf %18, %19 : vector<8x128xf32>
    %21 = vector.extract_strided_slice %20 {offsets = [0, 0], sizes = [8, 32], strides = [1, 1]} : vector<8x128xf32> to vector<8x32xf32>
    %22 = vector.extract_strided_slice %20 {offsets = [0, 32], sizes = [8, 32], strides = [1, 1]} : vector<8x128xf32> to vector<8x32xf32>
    %23 = vector.extract_strided_slice %20 {offsets = [0, 64], sizes = [8, 32], strides = [1, 1]} : vector<8x128xf32> to vector<8x32xf32>
    %cst_16 = arith.constant 2.000000e+00 : f32
    %24 = vector.broadcast %cst_16 : f32 to vector<8x32xf32>
    %25 = arith.mulf %24, %23 : vector<8x32xf32>
    %cst_17 = arith.constant 1.000000e+00 : f32
    %26 = vector.broadcast %cst_17 : f32 to vector<8x32xf32>
    %27 = arith.subf %25, %26 : vector<8x32xf32>
    %28 = vector.extract_strided_slice %20 {offsets = [0, 96], sizes = [8, 32], strides = [1, 1]} : vector<8x128xf32> to vector<8x32xf32>
    %29 = arith.mulf %22, %12 : vector<8x32xf32>
    %30 = arith.mulf %21, %27 : vector<8x32xf32>
    %31 = arith.addf %29, %30 : vector<8x32xf32>
    %32 = math.tanh %31 : vector<8x32xf32>
    %33 = arith.mulf %28, %32 : vector<8x32xf32>
    %cst_18 = arith.constant dense<0.000000e+00> : vector<8x128xf32>
    %34 = tpu.matmul %33, %1, %cst_18 {dimension_numbers = #tpu.dot_dimension_numbers<[1], [0], [0], [1], [0, 0, 1, 1], [], []>} : vector<8x32xf32>, vector<32x128xf32>, vector<8x128xf32> -> vector<8x128xf32>
    %cst_19 = arith.constant dense<0.000000e+00> : vector<8x128xf32>
    %35 = tpu.matmul %12, %2, %cst_19 {dimension_numbers = #tpu.dot_dimension_numbers<[1], [0], [0], [1], [0, 0, 1, 1], [], []>} : vector<8x32xf32>, vector<32x128xf32>, vector<8x128xf32> -> vector<8x128xf32>
    %36 = arith.addf %34, %35 : vector<8x128xf32>
    %37 = arith.addf %36, %11 : vector<8x128xf32>
    %38 = arith.negf %37 : vector<8x128xf32>
    %39 = math.exp %38 : vector<8x128xf32>
    %cst_20 = arith.constant 1.000000e+00 : f32
    %40 = vector.broadcast %cst_20 : f32 to vector<8x128xf32>
    %41 = arith.addf %40, %39 : vector<8x128xf32>
    %42 = arith.divf %40, %41 : vector<8x128xf32>
    %43 = vector.extract_strided_slice %42 {offsets = [0, 0], sizes = [8, 32], strides = [1, 1]} : vector<8x128xf32> to vector<8x32xf32>
    %44 = vector.extract_strided_slice %42 {offsets = [0, 32], sizes = [8, 32], strides = [1, 1]} : vector<8x128xf32> to vector<8x32xf32>
    %45 = vector.extract_strided_slice %42 {offsets = [0, 64], sizes = [8, 32], strides = [1, 1]} : vector<8x128xf32> to vector<8x32xf32>
    %cst_21 = arith.constant 2.000000e+00 : f32
    %46 = vector.broadcast %cst_21 : f32 to vector<8x32xf32>
    %47 = arith.mulf %46, %45 : vector<8x32xf32>
    %cst_22 = arith.constant 1.000000e+00 : f32
    %48 = vector.broadcast %cst_22 : f32 to vector<8x32xf32>
    %49 = arith.subf %47, %48 : vector<8x32xf32>
    %50 = vector.extract_strided_slice %42 {offsets = [0, 96], sizes = [8, 32], strides = [1, 1]} : vector<8x128xf32> to vector<8x32xf32>
    %51 = arith.mulf %44, %12 : vector<8x32xf32>
    %52 = arith.mulf %43, %49 : vector<8x32xf32>
    %53 = arith.addf %51, %52 : vector<8x32xf32>
    %54 = math.tanh %53 : vector<8x32xf32>
    %55 = arith.mulf %50, %54 : vector<8x32xf32>
    %56 = vector.extract_strided_slice %8 {offsets = [8, 0], sizes = [8, 128], strides = [1, 1]} : vector<64x128xf32> to vector<8x128xf32>
    %cst_23 = arith.constant dense<0.000000e+00> : vector<8x128xf32>
    %57 = tpu.matmul %33, %0, %cst_23 {dimension_numbers = #tpu.dot_dimension_numbers<[1], [0], [0], [1], [0, 0, 1, 1], [], []>} : vector<8x32xf32>, vector<32x128xf32>, vector<8x128xf32> -> vector<8x128xf32>
    %58 = arith.addf %56, %57 : vector<8x128xf32>
    %59 = arith.negf %58 : vector<8x128xf32>
    %60 = math.exp %59 : vector<8x128xf32>
    %cst_24 = arith.constant 1.000000e+00 : f32
    %61 = vector.broadcast %cst_24 : f32 to vector<8x128xf32>
    %62 = arith.addf %61, %60 : vector<8x128xf32>
    %63 = arith.divf %61, %62 : vector<8x128xf32>
    %64 = vector.extract_strided_slice %63 {offsets = [0, 0], sizes = [8, 32], strides = [1, 1]} : vector<8x128xf32> to vector<8x32xf32>
    %65 = vector.extract_strided_slice %63 {offsets = [0, 32], sizes = [8, 32], strides = [1, 1]} : vector<8x128xf32> to vector<8x32xf32>
    %66 = vector.extract_strided_slice %63 {offsets = [0, 64], sizes = [8, 32], strides = [1, 1]} : vector<8x128xf32> to vector<8x32xf32>
    %cst_25 = arith.constant 2.000000e+00 : f32
    %67 = vector.broadcast %cst_25 : f32 to vector<8x32xf32>
    %68 = arith.mulf %67, %66 : vector<8x32xf32>
    %cst_26 = arith.constant 1.000000e+00 : f32
    %69 = vector.broadcast %cst_26 : f32 to vector<8x32xf32>
    %70 = arith.subf %68, %69 : vector<8x32xf32>
    %71 = vector.extract_strided_slice %63 {offsets = [0, 96], sizes = [8, 32], strides = [1, 1]} : vector<8x128xf32> to vector<8x32xf32>
    %72 = arith.mulf %65, %31 : vector<8x32xf32>
    %73 = arith.mulf %64, %70 : vector<8x32xf32>
    %74 = arith.addf %72, %73 : vector<8x32xf32>
    %75 = math.tanh %74 : vector<8x32xf32>
    %76 = arith.mulf %71, %75 : vector<8x32xf32>
    %cst_27 = arith.constant dense<0.000000e+00> : vector<8x128xf32>
    %77 = tpu.matmul %76, %1, %cst_27 {dimension_numbers = #tpu.dot_dimension_numbers<[1], [0], [0], [1], [0, 0, 1, 1], [], []>} : vector<8x32xf32>, vector<32x128xf32>, vector<8x128xf32> -> vector<8x128xf32>
    %cst_28 = arith.constant dense<0.000000e+00> : vector<8x128xf32>
    %78 = tpu.matmul %55, %2, %cst_28 {dimension_numbers = #tpu.dot_dimension_numbers<[1], [0], [0], [1], [0, 0, 1, 1], [], []>} : vector<8x32xf32>, vector<32x128xf32>, vector<8x128xf32> -> vector<8x128xf32>
    %79 = arith.addf %77, %78 : vector<8x128xf32>
    %80 = arith.addf %79, %11 : vector<8x128xf32>
    %81 = arith.negf %80 : vector<8x128xf32>
    %82 = math.exp %81 : vector<8x128xf32>
    %cst_29 = arith.constant 1.000000e+00 : f32
    %83 = vector.broadcast %cst_29 : f32 to vector<8x128xf32>
    %84 = arith.addf %83, %82 : vector<8x128xf32>
    %85 = arith.divf %83, %84 : vector<8x128xf32>
    %86 = vector.extract_strided_slice %85 {offsets = [0, 0], sizes = [8, 32], strides = [1, 1]} : vector<8x128xf32> to vector<8x32xf32>
    %87 = vector.extract_strided_slice %85 {offsets = [0, 32], sizes = [8, 32], strides = [1, 1]} : vector<8x128xf32> to vector<8x32xf32>
    %88 = vector.extract_strided_slice %85 {offsets = [0, 64], sizes = [8, 32], strides = [1, 1]} : vector<8x128xf32> to vector<8x32xf32>
    %cst_30 = arith.constant 2.000000e+00 : f32
    %89 = vector.broadcast %cst_30 : f32 to vector<8x32xf32>
    %90 = arith.mulf %89, %88 : vector<8x32xf32>
    %cst_31 = arith.constant 1.000000e+00 : f32
    %91 = vector.broadcast %cst_31 : f32 to vector<8x32xf32>
    %92 = arith.subf %90, %91 : vector<8x32xf32>
    %93 = vector.extract_strided_slice %85 {offsets = [0, 96], sizes = [8, 32], strides = [1, 1]} : vector<8x128xf32> to vector<8x32xf32>
    %94 = arith.mulf %87, %53 : vector<8x32xf32>
    %95 = arith.mulf %86, %92 : vector<8x32xf32>
    %96 = arith.addf %94, %95 : vector<8x32xf32>
    %97 = math.tanh %96 : vector<8x32xf32>
    %98 = arith.mulf %93, %97 : vector<8x32xf32>
    %99 = vector.extract_strided_slice %8 {offsets = [16, 0], sizes = [8, 128], strides = [1, 1]} : vector<64x128xf32> to vector<8x128xf32>
    %cst_32 = arith.constant dense<0.000000e+00> : vector<8x128xf32>
    %100 = tpu.matmul %76, %0, %cst_32 {dimension_numbers = #tpu.dot_dimension_numbers<[1], [0], [0], [1], [0, 0, 1, 1], [], []>} : vector<8x32xf32>, vector<32x128xf32>, vector<8x128xf32> -> vector<8x128xf32>
    %101 = arith.addf %99, %100 : vector<8x128xf32>
    %102 = arith.negf %101 : vector<8x128xf32>
    %103 = math.exp %102 : vector<8x128xf32>
    %cst_33 = arith.constant 1.000000e+00 : f32
    %104 = vector.broadcast %cst_33 : f32 to vector<8x128xf32>
    %105 = arith.addf %104, %103 : vector<8x128xf32>
    %106 = arith.divf %104, %105 : vector<8x128xf32>
    %107 = vector.extract_strided_slice %106 {offsets = [0, 0], sizes = [8, 32], strides = [1, 1]} : vector<8x128xf32> to vector<8x32xf32>
    %108 = vector.extract_strided_slice %106 {offsets = [0, 32], sizes = [8, 32], strides = [1, 1]} : vector<8x128xf32> to vector<8x32xf32>
    %109 = vector.extract_strided_slice %106 {offsets = [0, 64], sizes = [8, 32], strides = [1, 1]} : vector<8x128xf32> to vector<8x32xf32>
    %cst_34 = arith.constant 2.000000e+00 : f32
    %110 = vector.broadcast %cst_34 : f32 to vector<8x32xf32>
    %111 = arith.mulf %110, %109 : vector<8x32xf32>
    %cst_35 = arith.constant 1.000000e+00 : f32
    %112 = vector.broadcast %cst_35 : f32 to vector<8x32xf32>
    %113 = arith.subf %111, %112 : vector<8x32xf32>
    %114 = vector.extract_strided_slice %106 {offsets = [0, 96], sizes = [8, 32], strides = [1, 1]} : vector<8x128xf32> to vector<8x32xf32>
    %115 = arith.mulf %108, %74 : vector<8x32xf32>
    %116 = arith.mulf %107, %113 : vector<8x32xf32>
    %117 = arith.addf %115, %116 : vector<8x32xf32>
    %118 = math.tanh %117 : vector<8x32xf32>
    %119 = arith.mulf %114, %118 : vector<8x32xf32>
    %cst_36 = arith.constant dense<0.000000e+00> : vector<8x128xf32>
    %120 = tpu.matmul %119, %1, %cst_36 {dimension_numbers = #tpu.dot_dimension_numbers<[1], [0], [0], [1], [0, 0, 1, 1], [], []>} : vector<8x32xf32>, vector<32x128xf32>, vector<8x128xf32> -> vector<8x128xf32>
    %cst_37 = arith.constant dense<0.000000e+00> : vector<8x128xf32>
    %121 = tpu.matmul %98, %2, %cst_37 {dimension_numbers = #tpu.dot_dimension_numbers<[1], [0], [0], [1], [0, 0, 1, 1], [], []>} : vector<8x32xf32>, vector<32x128xf32>, vector<8x128xf32> -> vector<8x128xf32>
    %122 = arith.addf %120, %121 : vector<8x128xf32>
    %123 = arith.addf %122, %11 : vector<8x128xf32>
    %124 = arith.negf %123 : vector<8x128xf32>
    %125 = math.exp %124 : vector<8x128xf32>
    %cst_38 = arith.constant 1.000000e+00 : f32
    %126 = vector.broadcast %cst_38 : f32 to vector<8x128xf32>
    %127 = arith.addf %126, %125 : vector<8x128xf32>
    %128 = arith.divf %126, %127 : vector<8x128xf32>
    %129 = vector.extract_strided_slice %128 {offsets = [0, 0], sizes = [8, 32], strides = [1, 1]} : vector<8x128xf32> to vector<8x32xf32>
    %130 = vector.extract_strided_slice %128 {offsets = [0, 32], sizes = [8, 32], strides = [1, 1]} : vector<8x128xf32> to vector<8x32xf32>
    %131 = vector.extract_strided_slice %128 {offsets = [0, 64], sizes = [8, 32], strides = [1, 1]} : vector<8x128xf32> to vector<8x32xf32>
    %cst_39 = arith.constant 2.000000e+00 : f32
    %132 = vector.broadcast %cst_39 : f32 to vector<8x32xf32>
    %133 = arith.mulf %132, %131 : vector<8x32xf32>
    %cst_40 = arith.constant 1.000000e+00 : f32
    %134 = vector.broadcast %cst_40 : f32 to vector<8x32xf32>
    %135 = arith.subf %133, %134 : vector<8x32xf32>
    %136 = vector.extract_strided_slice %128 {offsets = [0, 96], sizes = [8, 32], strides = [1, 1]} : vector<8x128xf32> to vector<8x32xf32>
    %137 = arith.mulf %130, %96 : vector<8x32xf32>
    %138 = arith.mulf %129, %135 : vector<8x32xf32>
    %139 = arith.addf %137, %138 : vector<8x32xf32>
    %140 = math.tanh %139 : vector<8x32xf32>
    %141 = arith.mulf %136, %140 : vector<8x32xf32>
    %142 = vector.extract_strided_slice %8 {offsets = [24, 0], sizes = [8, 128], strides = [1, 1]} : vector<64x128xf32> to vector<8x128xf32>
    %cst_41 = arith.constant dense<0.000000e+00> : vector<8x128xf32>
    %143 = tpu.matmul %119, %0, %cst_41 {dimension_numbers = #tpu.dot_dimension_numbers<[1], [0], [0], [1], [0, 0, 1, 1], [], []>} : vector<8x32xf32>, vector<32x128xf32>, vector<8x128xf32> -> vector<8x128xf32>
    %144 = arith.addf %142, %143 : vector<8x128xf32>
    %145 = arith.negf %144 : vector<8x128xf32>
    %146 = math.exp %145 : vector<8x128xf32>
    %cst_42 = arith.constant 1.000000e+00 : f32
    %147 = vector.broadcast %cst_42 : f32 to vector<8x128xf32>
    %148 = arith.addf %147, %146 : vector<8x128xf32>
    %149 = arith.divf %147, %148 : vector<8x128xf32>
    %150 = vector.extract_strided_slice %149 {offsets = [0, 0], sizes = [8, 32], strides = [1, 1]} : vector<8x128xf32> to vector<8x32xf32>
    %151 = vector.extract_strided_slice %149 {offsets = [0, 32], sizes = [8, 32], strides = [1, 1]} : vector<8x128xf32> to vector<8x32xf32>
    %152 = vector.extract_strided_slice %149 {offsets = [0, 64], sizes = [8, 32], strides = [1, 1]} : vector<8x128xf32> to vector<8x32xf32>
    %cst_43 = arith.constant 2.000000e+00 : f32
    %153 = vector.broadcast %cst_43 : f32 to vector<8x32xf32>
    %154 = arith.mulf %153, %152 : vector<8x32xf32>
    %cst_44 = arith.constant 1.000000e+00 : f32
    %155 = vector.broadcast %cst_44 : f32 to vector<8x32xf32>
    %156 = arith.subf %154, %155 : vector<8x32xf32>
    %157 = vector.extract_strided_slice %149 {offsets = [0, 96], sizes = [8, 32], strides = [1, 1]} : vector<8x128xf32> to vector<8x32xf32>
    %158 = arith.mulf %151, %117 : vector<8x32xf32>
    %159 = arith.mulf %150, %156 : vector<8x32xf32>
    %160 = arith.addf %158, %159 : vector<8x32xf32>
    %161 = math.tanh %160 : vector<8x32xf32>
    %162 = arith.mulf %157, %161 : vector<8x32xf32>
    %cst_45 = arith.constant dense<0.000000e+00> : vector<8x128xf32>
    %163 = tpu.matmul %162, %1, %cst_45 {dimension_numbers = #tpu.dot_dimension_numbers<[1], [0], [0], [1], [0, 0, 1, 1], [], []>} : vector<8x32xf32>, vector<32x128xf32>, vector<8x128xf32> -> vector<8x128xf32>
    %cst_46 = arith.constant dense<0.000000e+00> : vector<8x128xf32>
    %164 = tpu.matmul %141, %2, %cst_46 {dimension_numbers = #tpu.dot_dimension_numbers<[1], [0], [0], [1], [0, 0, 1, 1], [], []>} : vector<8x32xf32>, vector<32x128xf32>, vector<8x128xf32> -> vector<8x128xf32>
    %165 = arith.addf %163, %164 : vector<8x128xf32>
    %166 = arith.addf %165, %11 : vector<8x128xf32>
    %167 = arith.negf %166 : vector<8x128xf32>
    %168 = math.exp %167 : vector<8x128xf32>
    %cst_47 = arith.constant 1.000000e+00 : f32
    %169 = vector.broadcast %cst_47 : f32 to vector<8x128xf32>
    %170 = arith.addf %169, %168 : vector<8x128xf32>
    %171 = arith.divf %169, %170 : vector<8x128xf32>
    %172 = vector.extract_strided_slice %171 {offsets = [0, 0], sizes = [8, 32], strides = [1, 1]} : vector<8x128xf32> to vector<8x32xf32>
    %173 = vector.extract_strided_slice %171 {offsets = [0, 32], sizes = [8, 32], strides = [1, 1]} : vector<8x128xf32> to vector<8x32xf32>
    %174 = vector.extract_strided_slice %171 {offsets = [0, 64], sizes = [8, 32], strides = [1, 1]} : vector<8x128xf32> to vector<8x32xf32>
    %cst_48 = arith.constant 2.000000e+00 : f32
    %175 = vector.broadcast %cst_48 : f32 to vector<8x32xf32>
    %176 = arith.mulf %175, %174 : vector<8x32xf32>
    %cst_49 = arith.constant 1.000000e+00 : f32
    %177 = vector.broadcast %cst_49 : f32 to vector<8x32xf32>
    %178 = arith.subf %176, %177 : vector<8x32xf32>
    %179 = vector.extract_strided_slice %171 {offsets = [0, 96], sizes = [8, 32], strides = [1, 1]} : vector<8x128xf32> to vector<8x32xf32>
    %180 = arith.mulf %173, %139 : vector<8x32xf32>
    %181 = arith.mulf %172, %178 : vector<8x32xf32>
    %182 = arith.addf %180, %181 : vector<8x32xf32>
    %183 = math.tanh %182 : vector<8x32xf32>
    %184 = arith.mulf %179, %183 : vector<8x32xf32>
    %185 = vector.extract_strided_slice %8 {offsets = [32, 0], sizes = [8, 128], strides = [1, 1]} : vector<64x128xf32> to vector<8x128xf32>
    %cst_50 = arith.constant dense<0.000000e+00> : vector<8x128xf32>
    %186 = tpu.matmul %162, %0, %cst_50 {dimension_numbers = #tpu.dot_dimension_numbers<[1], [0], [0], [1], [0, 0, 1, 1], [], []>} : vector<8x32xf32>, vector<32x128xf32>, vector<8x128xf32> -> vector<8x128xf32>
    %187 = arith.addf %185, %186 : vector<8x128xf32>
    %188 = arith.negf %187 : vector<8x128xf32>
    %189 = math.exp %188 : vector<8x128xf32>
    %cst_51 = arith.constant 1.000000e+00 : f32
    %190 = vector.broadcast %cst_51 : f32 to vector<8x128xf32>
    %191 = arith.addf %190, %189 : vector<8x128xf32>
    %192 = arith.divf %190, %191 : vector<8x128xf32>
    %193 = vector.extract_strided_slice %192 {offsets = [0, 0], sizes = [8, 32], strides = [1, 1]} : vector<8x128xf32> to vector<8x32xf32>
    %194 = vector.extract_strided_slice %192 {offsets = [0, 32], sizes = [8, 32], strides = [1, 1]} : vector<8x128xf32> to vector<8x32xf32>
    %195 = vector.extract_strided_slice %192 {offsets = [0, 64], sizes = [8, 32], strides = [1, 1]} : vector<8x128xf32> to vector<8x32xf32>
    %cst_52 = arith.constant 2.000000e+00 : f32
    %196 = vector.broadcast %cst_52 : f32 to vector<8x32xf32>
    %197 = arith.mulf %196, %195 : vector<8x32xf32>
    %cst_53 = arith.constant 1.000000e+00 : f32
    %198 = vector.broadcast %cst_53 : f32 to vector<8x32xf32>
    %199 = arith.subf %197, %198 : vector<8x32xf32>
    %200 = vector.extract_strided_slice %192 {offsets = [0, 96], sizes = [8, 32], strides = [1, 1]} : vector<8x128xf32> to vector<8x32xf32>
    %201 = arith.mulf %194, %160 : vector<8x32xf32>
    %202 = arith.mulf %193, %199 : vector<8x32xf32>
    %203 = arith.addf %201, %202 : vector<8x32xf32>
    %204 = math.tanh %203 : vector<8x32xf32>
    %205 = arith.mulf %200, %204 : vector<8x32xf32>
    %cst_54 = arith.constant dense<0.000000e+00> : vector<8x128xf32>
    %206 = tpu.matmul %205, %1, %cst_54 {dimension_numbers = #tpu.dot_dimension_numbers<[1], [0], [0], [1], [0, 0, 1, 1], [], []>} : vector<8x32xf32>, vector<32x128xf32>, vector<8x128xf32> -> vector<8x128xf32>
    %cst_55 = arith.constant dense<0.000000e+00> : vector<8x128xf32>
    %207 = tpu.matmul %184, %2, %cst_55 {dimension_numbers = #tpu.dot_dimension_numbers<[1], [0], [0], [1], [0, 0, 1, 1], [], []>} : vector<8x32xf32>, vector<32x128xf32>, vector<8x128xf32> -> vector<8x128xf32>
    %208 = arith.addf %206, %207 : vector<8x128xf32>
    %209 = arith.addf %208, %11 : vector<8x128xf32>
    %210 = arith.negf %209 : vector<8x128xf32>
    %211 = math.exp %210 : vector<8x128xf32>
    %cst_56 = arith.constant 1.000000e+00 : f32
    %212 = vector.broadcast %cst_56 : f32 to vector<8x128xf32>
    %213 = arith.addf %212, %211 : vector<8x128xf32>
    %214 = arith.divf %212, %213 : vector<8x128xf32>
    %215 = vector.extract_strided_slice %214 {offsets = [0, 0], sizes = [8, 32], strides = [1, 1]} : vector<8x128xf32> to vector<8x32xf32>
    %216 = vector.extract_strided_slice %214 {offsets = [0, 32], sizes = [8, 32], strides = [1, 1]} : vector<8x128xf32> to vector<8x32xf32>
    %217 = vector.extract_strided_slice %214 {offsets = [0, 64], sizes = [8, 32], strides = [1, 1]} : vector<8x128xf32> to vector<8x32xf32>
    %cst_57 = arith.constant 2.000000e+00 : f32
    %218 = vector.broadcast %cst_57 : f32 to vector<8x32xf32>
    %219 = arith.mulf %218, %217 : vector<8x32xf32>
    %cst_58 = arith.constant 1.000000e+00 : f32
    %220 = vector.broadcast %cst_58 : f32 to vector<8x32xf32>
    %221 = arith.subf %219, %220 : vector<8x32xf32>
    %222 = vector.extract_strided_slice %214 {offsets = [0, 96], sizes = [8, 32], strides = [1, 1]} : vector<8x128xf32> to vector<8x32xf32>
    %223 = arith.mulf %216, %182 : vector<8x32xf32>
    %224 = arith.mulf %215, %221 : vector<8x32xf32>
    %225 = arith.addf %223, %224 : vector<8x32xf32>
    %226 = math.tanh %225 : vector<8x32xf32>
    %227 = arith.mulf %222, %226 : vector<8x32xf32>
    %228 = vector.extract_strided_slice %8 {offsets = [40, 0], sizes = [8, 128], strides = [1, 1]} : vector<64x128xf32> to vector<8x128xf32>
    %cst_59 = arith.constant dense<0.000000e+00> : vector<8x128xf32>
    %229 = tpu.matmul %205, %0, %cst_59 {dimension_numbers = #tpu.dot_dimension_numbers<[1], [0], [0], [1], [0, 0, 1, 1], [], []>} : vector<8x32xf32>, vector<32x128xf32>, vector<8x128xf32> -> vector<8x128xf32>
    %230 = arith.addf %228, %229 : vector<8x128xf32>
    %231 = arith.negf %230 : vector<8x128xf32>
    %232 = math.exp %231 : vector<8x128xf32>
    %cst_60 = arith.constant 1.000000e+00 : f32
    %233 = vector.broadcast %cst_60 : f32 to vector<8x128xf32>
    %234 = arith.addf %233, %232 : vector<8x128xf32>
    %235 = arith.divf %233, %234 : vector<8x128xf32>
    %236 = vector.extract_strided_slice %235 {offsets = [0, 0], sizes = [8, 32], strides = [1, 1]} : vector<8x128xf32> to vector<8x32xf32>
    %237 = vector.extract_strided_slice %235 {offsets = [0, 32], sizes = [8, 32], strides = [1, 1]} : vector<8x128xf32> to vector<8x32xf32>
    %238 = vector.extract_strided_slice %235 {offsets = [0, 64], sizes = [8, 32], strides = [1, 1]} : vector<8x128xf32> to vector<8x32xf32>
    %cst_61 = arith.constant 2.000000e+00 : f32
    %239 = vector.broadcast %cst_61 : f32 to vector<8x32xf32>
    %240 = arith.mulf %239, %238 : vector<8x32xf32>
    %cst_62 = arith.constant 1.000000e+00 : f32
    %241 = vector.broadcast %cst_62 : f32 to vector<8x32xf32>
    %242 = arith.subf %240, %241 : vector<8x32xf32>
    %243 = vector.extract_strided_slice %235 {offsets = [0, 96], sizes = [8, 32], strides = [1, 1]} : vector<8x128xf32> to vector<8x32xf32>
    %244 = arith.mulf %237, %203 : vector<8x32xf32>
    %245 = arith.mulf %236, %242 : vector<8x32xf32>
    %246 = arith.addf %244, %245 : vector<8x32xf32>
    %247 = math.tanh %246 : vector<8x32xf32>
    %248 = arith.mulf %243, %247 : vector<8x32xf32>
    %cst_63 = arith.constant dense<0.000000e+00> : vector<8x128xf32>
    %249 = tpu.matmul %248, %1, %cst_63 {dimension_numbers = #tpu.dot_dimension_numbers<[1], [0], [0], [1], [0, 0, 1, 1], [], []>} : vector<8x32xf32>, vector<32x128xf32>, vector<8x128xf32> -> vector<8x128xf32>
    %cst_64 = arith.constant dense<0.000000e+00> : vector<8x128xf32>
    %250 = tpu.matmul %227, %2, %cst_64 {dimension_numbers = #tpu.dot_dimension_numbers<[1], [0], [0], [1], [0, 0, 1, 1], [], []>} : vector<8x32xf32>, vector<32x128xf32>, vector<8x128xf32> -> vector<8x128xf32>
    %251 = arith.addf %249, %250 : vector<8x128xf32>
    %252 = arith.addf %251, %11 : vector<8x128xf32>
    %253 = arith.negf %252 : vector<8x128xf32>
    %254 = math.exp %253 : vector<8x128xf32>
    %cst_65 = arith.constant 1.000000e+00 : f32
    %255 = vector.broadcast %cst_65 : f32 to vector<8x128xf32>
    %256 = arith.addf %255, %254 : vector<8x128xf32>
    %257 = arith.divf %255, %256 : vector<8x128xf32>
    %258 = vector.extract_strided_slice %257 {offsets = [0, 0], sizes = [8, 32], strides = [1, 1]} : vector<8x128xf32> to vector<8x32xf32>
    %259 = vector.extract_strided_slice %257 {offsets = [0, 32], sizes = [8, 32], strides = [1, 1]} : vector<8x128xf32> to vector<8x32xf32>
    %260 = vector.extract_strided_slice %257 {offsets = [0, 64], sizes = [8, 32], strides = [1, 1]} : vector<8x128xf32> to vector<8x32xf32>
    %cst_66 = arith.constant 2.000000e+00 : f32
    %261 = vector.broadcast %cst_66 : f32 to vector<8x32xf32>
    %262 = arith.mulf %261, %260 : vector<8x32xf32>
    %cst_67 = arith.constant 1.000000e+00 : f32
    %263 = vector.broadcast %cst_67 : f32 to vector<8x32xf32>
    %264 = arith.subf %262, %263 : vector<8x32xf32>
    %265 = vector.extract_strided_slice %257 {offsets = [0, 96], sizes = [8, 32], strides = [1, 1]} : vector<8x128xf32> to vector<8x32xf32>
    %266 = arith.mulf %259, %225 : vector<8x32xf32>
    %267 = arith.mulf %258, %264 : vector<8x32xf32>
    %268 = arith.addf %266, %267 : vector<8x32xf32>
    %269 = math.tanh %268 : vector<8x32xf32>
    %270 = arith.mulf %265, %269 : vector<8x32xf32>
    %271 = vector.extract_strided_slice %8 {offsets = [48, 0], sizes = [8, 128], strides = [1, 1]} : vector<64x128xf32> to vector<8x128xf32>
    %cst_68 = arith.constant dense<0.000000e+00> : vector<8x128xf32>
    %272 = tpu.matmul %248, %0, %cst_68 {dimension_numbers = #tpu.dot_dimension_numbers<[1], [0], [0], [1], [0, 0, 1, 1], [], []>} : vector<8x32xf32>, vector<32x128xf32>, vector<8x128xf32> -> vector<8x128xf32>
    %273 = arith.addf %271, %272 : vector<8x128xf32>
    %274 = arith.negf %273 : vector<8x128xf32>
    %275 = math.exp %274 : vector<8x128xf32>
    %cst_69 = arith.constant 1.000000e+00 : f32
    %276 = vector.broadcast %cst_69 : f32 to vector<8x128xf32>
    %277 = arith.addf %276, %275 : vector<8x128xf32>
    %278 = arith.divf %276, %277 : vector<8x128xf32>
    %279 = vector.extract_strided_slice %278 {offsets = [0, 0], sizes = [8, 32], strides = [1, 1]} : vector<8x128xf32> to vector<8x32xf32>
    %280 = vector.extract_strided_slice %278 {offsets = [0, 32], sizes = [8, 32], strides = [1, 1]} : vector<8x128xf32> to vector<8x32xf32>
    %281 = vector.extract_strided_slice %278 {offsets = [0, 64], sizes = [8, 32], strides = [1, 1]} : vector<8x128xf32> to vector<8x32xf32>
    %cst_70 = arith.constant 2.000000e+00 : f32
    %282 = vector.broadcast %cst_70 : f32 to vector<8x32xf32>
    %283 = arith.mulf %282, %281 : vector<8x32xf32>
    %cst_71 = arith.constant 1.000000e+00 : f32
    %284 = vector.broadcast %cst_71 : f32 to vector<8x32xf32>
    %285 = arith.subf %283, %284 : vector<8x32xf32>
    %286 = vector.extract_strided_slice %278 {offsets = [0, 96], sizes = [8, 32], strides = [1, 1]} : vector<8x128xf32> to vector<8x32xf32>
    %287 = arith.mulf %280, %246 : vector<8x32xf32>
    %288 = arith.mulf %279, %285 : vector<8x32xf32>
    %289 = arith.addf %287, %288 : vector<8x32xf32>
    %290 = math.tanh %289 : vector<8x32xf32>
    %291 = arith.mulf %286, %290 : vector<8x32xf32>
    %cst_72 = arith.constant dense<0.000000e+00> : vector<8x128xf32>
    %292 = tpu.matmul %291, %1, %cst_72 {dimension_numbers = #tpu.dot_dimension_numbers<[1], [0], [0], [1], [0, 0, 1, 1], [], []>} : vector<8x32xf32>, vector<32x128xf32>, vector<8x128xf32> -> vector<8x128xf32>
    %cst_73 = arith.constant dense<0.000000e+00> : vector<8x128xf32>
    %293 = tpu.matmul %270, %2, %cst_73 {dimension_numbers = #tpu.dot_dimension_numbers<[1], [0], [0], [1], [0, 0, 1, 1], [], []>} : vector<8x32xf32>, vector<32x128xf32>, vector<8x128xf32> -> vector<8x128xf32>
    %294 = arith.addf %292, %293 : vector<8x128xf32>
    %295 = arith.addf %294, %11 : vector<8x128xf32>
    %296 = arith.negf %295 : vector<8x128xf32>
    %297 = math.exp %296 : vector<8x128xf32>
    %cst_74 = arith.constant 1.000000e+00 : f32
    %298 = vector.broadcast %cst_74 : f32 to vector<8x128xf32>
    %299 = arith.addf %298, %297 : vector<8x128xf32>
    %300 = arith.divf %298, %299 : vector<8x128xf32>
    %301 = vector.extract_strided_slice %300 {offsets = [0, 0], sizes = [8, 32], strides = [1, 1]} : vector<8x128xf32> to vector<8x32xf32>
    %302 = vector.extract_strided_slice %300 {offsets = [0, 32], sizes = [8, 32], strides = [1, 1]} : vector<8x128xf32> to vector<8x32xf32>
    %303 = vector.extract_strided_slice %300 {offsets = [0, 64], sizes = [8, 32], strides = [1, 1]} : vector<8x128xf32> to vector<8x32xf32>
    %cst_75 = arith.constant 2.000000e+00 : f32
    %304 = vector.broadcast %cst_75 : f32 to vector<8x32xf32>
    %305 = arith.mulf %304, %303 : vector<8x32xf32>
    %cst_76 = arith.constant 1.000000e+00 : f32
    %306 = vector.broadcast %cst_76 : f32 to vector<8x32xf32>
    %307 = arith.subf %305, %306 : vector<8x32xf32>
    %308 = vector.extract_strided_slice %300 {offsets = [0, 96], sizes = [8, 32], strides = [1, 1]} : vector<8x128xf32> to vector<8x32xf32>
    %309 = arith.mulf %302, %268 : vector<8x32xf32>
    %310 = arith.mulf %301, %307 : vector<8x32xf32>
    %311 = arith.addf %309, %310 : vector<8x32xf32>
    %312 = math.tanh %311 : vector<8x32xf32>
    %313 = arith.mulf %308, %312 : vector<8x32xf32>
    %314 = vector.extract_strided_slice %8 {offsets = [56, 0], sizes = [8, 128], strides = [1, 1]} : vector<64x128xf32> to vector<8x128xf32>
    %cst_77 = arith.constant dense<0.000000e+00> : vector<8x128xf32>
    %315 = tpu.matmul %291, %0, %cst_77 {dimension_numbers = #tpu.dot_dimension_numbers<[1], [0], [0], [1], [0, 0, 1, 1], [], []>} : vector<8x32xf32>, vector<32x128xf32>, vector<8x128xf32> -> vector<8x128xf32>
    %316 = arith.addf %314, %315 : vector<8x128xf32>
    %317 = arith.negf %316 : vector<8x128xf32>
    %318 = math.exp %317 : vector<8x128xf32>
    %cst_78 = arith.constant 1.000000e+00 : f32
    %319 = vector.broadcast %cst_78 : f32 to vector<8x128xf32>
    %320 = arith.addf %319, %318 : vector<8x128xf32>
    %321 = arith.divf %319, %320 : vector<8x128xf32>
    %322 = vector.extract_strided_slice %321 {offsets = [0, 0], sizes = [8, 32], strides = [1, 1]} : vector<8x128xf32> to vector<8x32xf32>
    %323 = vector.extract_strided_slice %321 {offsets = [0, 32], sizes = [8, 32], strides = [1, 1]} : vector<8x128xf32> to vector<8x32xf32>
    %324 = vector.extract_strided_slice %321 {offsets = [0, 64], sizes = [8, 32], strides = [1, 1]} : vector<8x128xf32> to vector<8x32xf32>
    %cst_79 = arith.constant 2.000000e+00 : f32
    %325 = vector.broadcast %cst_79 : f32 to vector<8x32xf32>
    %326 = arith.mulf %325, %324 : vector<8x32xf32>
    %cst_80 = arith.constant 1.000000e+00 : f32
    %327 = vector.broadcast %cst_80 : f32 to vector<8x32xf32>
    %328 = arith.subf %326, %327 : vector<8x32xf32>
    %329 = vector.extract_strided_slice %321 {offsets = [0, 96], sizes = [8, 32], strides = [1, 1]} : vector<8x128xf32> to vector<8x32xf32>
    %330 = arith.mulf %323, %289 : vector<8x32xf32>
    %331 = arith.mulf %322, %328 : vector<8x32xf32>
    %332 = arith.addf %330, %331 : vector<8x32xf32>
    %333 = math.tanh %332 : vector<8x32xf32>
    %334 = arith.mulf %329, %333 : vector<8x32xf32>
    %cst_81 = arith.constant dense<0.000000e+00> : vector<8x128xf32>
    %335 = tpu.matmul %334, %1, %cst_81 {dimension_numbers = #tpu.dot_dimension_numbers<[1], [0], [0], [1], [0, 0, 1, 1], [], []>} : vector<8x32xf32>, vector<32x128xf32>, vector<8x128xf32> -> vector<8x128xf32>
    %cst_82 = arith.constant dense<0.000000e+00> : vector<8x128xf32>
    %336 = tpu.matmul %313, %2, %cst_82 {dimension_numbers = #tpu.dot_dimension_numbers<[1], [0], [0], [1], [0, 0, 1, 1], [], []>} : vector<8x32xf32>, vector<32x128xf32>, vector<8x128xf32> -> vector<8x128xf32>
    %337 = arith.addf %335, %336 : vector<8x128xf32>
    %338 = arith.addf %337, %11 : vector<8x128xf32>
    %339 = arith.negf %338 : vector<8x128xf32>
    %340 = math.exp %339 : vector<8x128xf32>
    %cst_83 = arith.constant 1.000000e+00 : f32
    %341 = vector.broadcast %cst_83 : f32 to vector<8x128xf32>
    %342 = arith.addf %341, %340 : vector<8x128xf32>
    %343 = arith.divf %341, %342 : vector<8x128xf32>
    %344 = vector.extract_strided_slice %343 {offsets = [0, 0], sizes = [8, 32], strides = [1, 1]} : vector<8x128xf32> to vector<8x32xf32>
    %345 = vector.extract_strided_slice %343 {offsets = [0, 32], sizes = [8, 32], strides = [1, 1]} : vector<8x128xf32> to vector<8x32xf32>
    %346 = vector.extract_strided_slice %343 {offsets = [0, 64], sizes = [8, 32], strides = [1, 1]} : vector<8x128xf32> to vector<8x32xf32>
    %cst_84 = arith.constant 2.000000e+00 : f32
    %347 = vector.broadcast %cst_84 : f32 to vector<8x32xf32>
    %348 = arith.mulf %347, %346 : vector<8x32xf32>
    %cst_85 = arith.constant 1.000000e+00 : f32
    %349 = vector.broadcast %cst_85 : f32 to vector<8x32xf32>
    %350 = arith.subf %348, %349 : vector<8x32xf32>
    %351 = vector.extract_strided_slice %343 {offsets = [0, 96], sizes = [8, 32], strides = [1, 1]} : vector<8x128xf32> to vector<8x32xf32>
    %352 = arith.mulf %345, %311 : vector<8x32xf32>
    %353 = arith.mulf %344, %350 : vector<8x32xf32>
    %354 = arith.addf %352, %353 : vector<8x32xf32>
    %355 = math.tanh %354 : vector<8x32xf32>
    %356 = arith.mulf %351, %355 : vector<8x32xf32>
    %c0_86 = arith.constant 0 : index
    %c0_87 = arith.constant 0 : index
    %357 = vector.load %arg7[%c0_86, %c0_87] : memref<1x32xf32, #tpu.memory_space<vmem>>, vector<1x32xf32>
    %358 = vector.broadcast %357 : vector<1x32xf32> to vector<8x32xf32>
    %359 = arith.mulf %356, %358 : vector<8x32xf32>
    %c0_88 = arith.constant 0 : index
    %c0_89 = arith.constant 0 : index
    %360 = vector.load %arg8[%c0_88, %c0_89] : memref<1x32xf32, #tpu.memory_space<vmem>>, vector<1x32xf32>
    %361 = vector.broadcast %360 : vector<1x32xf32> to vector<8x32xf32>
    %362 = arith.addf %359, %361 : vector<8x32xf32>
    %c0_90 = arith.constant 0 : index
    %c0_91 = arith.constant 0 : index
    %363 = vector.load %arg9[%c0_90, %c0_91] : memref<32x128xf32, #tpu.memory_space<vmem>>, vector<32x128xf32>
    %cst_92 = arith.constant dense<0.000000e+00> : vector<8x128xf32>
    %364 = tpu.matmul %362, %363, %cst_92 {dimension_numbers = #tpu.dot_dimension_numbers<[1], [0], [0], [1], [0, 0, 1, 1], [], []>} : vector<8x32xf32>, vector<32x128xf32>, vector<8x128xf32> -> vector<8x128xf32>
    %c0_93 = arith.constant 0 : index
    %c0_94 = arith.constant 0 : index
    %365 = vector.load %arg10[%c0_93, %c0_94] : memref<1x128xf32, #tpu.memory_space<vmem>>, vector<1x128xf32>
    %366 = vector.broadcast %365 : vector<1x128xf32> to vector<8x128xf32>
    %367 = arith.addf %364, %366 : vector<8x128xf32>
    %c0_95 = arith.constant 0 : index
    %c0_96 = arith.constant 0 : index
    %368 = vector.load %arg11[%c0_95, %c0_96] : memref<8x128xf32, #tpu.memory_space<vmem>>, vector<8x128xf32>
    tpu.vector_store %arg11[%c0_95, %c0_96], %367 {strides = array<i32>} : memref<8x128xf32, #tpu.memory_space<vmem>>, vector<8x128xf32>,
    return
  }
}

</mosaic_0001>

<llo_original>
// kernel: multi_output_lstm_forward.1
$region0: #{multi_output_lstm_forward.1}
  #allocation0 [shape = 'u32[]', space=smem, size = 0x4, offset = 0x4, fixed_abs, tag = 'smem constant byte address 0x4 - core index']
  #allocation1 [shape = 'u32[144,128]{1,0:T(1,128)}', space=vmem, size = 0x12000, scoped, tag = 'internal scratch']
  %s0 = inlined_call_operand.vmem [shape: f32[64,16], index: 0, kind: input, shape index: {}]
  %s1 = inlined_call_operand.vmem [shape: f32[16,128], index: 1, kind: input, shape index: {}]
  %s2 = inlined_call_operand.vmem [shape: f32[32,128], index: 2, kind: input, shape index: {}]
  %s3 = inlined_call_operand.vmem [shape: f32[1,128], index: 3, kind: input, shape index: {}]
  %s4 = inlined_call_operand.vmem [shape: f32[32,128], index: 4, kind: input, shape index: {}]
  %s5 = inlined_call_operand.vmem [shape: f32[32,128], index: 5, kind: input, shape index: {}]
  %s6 = inlined_call_operand.vmem [shape: f32[1,128], index: 6, kind: input, shape index: {}]
  %s7 = inlined_call_operand.vmem [shape: f32[1,32], index: 7, kind: input, shape index: {}]
  %s8 = inlined_call_operand.vmem [shape: f32[1,32], index: 8, kind: input, shape index: {}]
  %s9 = inlined_call_operand.vmem [shape: f32[32,128], index: 9, kind: input, shape index: {}]
  %s10 = inlined_call_operand.vmem [shape: f32[1,128], index: 10, kind: input, shape index: {}]
  %s11 = inlined_call_operand.vmem [shape: f32[8,128], index: 11, kind: output, shape index: {}]
  %s12 = sld [smem:[#allocation0]]
  $region54: #{multi_output_lstm_forward.1} parent=0
    _
  %s14 = ssub.s32 1, %s12
  %s15 = scalar_select 0, %s14, %s12
  // Predicated region
  $region2: #{multi_output_lstm_forward.1} parent=0 // pred_check
    _
  $region3: #{multi_output_lstm_forward.1} parent=0 // pred_check_branch
    %17 = sbr.rel (0) target = $region5
  $region4: #{multi_output_lstm_forward.1} parent=0 // pred_region
    _
  $region5: #{multi_output_lstm_forward.1} parent=0 // pred_fallthru
    _
  // Predicated region
  $region6: #{multi_output_lstm_forward.1} parent=0 // pred_check
    _
  $region7: #{multi_output_lstm_forward.1} parent=0 // pred_check_branch
    %19 = sbr.rel (0) target = $region9
  $region8: #{multi_output_lstm_forward.1} parent=0 // pred_region
    _
  $region9: #{multi_output_lstm_forward.1} parent=0 // pred_fallthru
    _
  // Predicated region
  $region10: #{multi_output_lstm_forward.1} parent=0 // pred_check
    _
  $region11: #{multi_output_lstm_forward.1} parent=0 // pred_check_branch
    %21 = sbr.rel (0) target = $region13
  $region12: #{multi_output_lstm_forward.1} parent=0 // pred_region
    _
  $region13: #{multi_output_lstm_forward.1} parent=0 // pred_fallthru
    _
  // Predicated region
  $region14: #{multi_output_lstm_forward.1} parent=0 // pred_check
    _
  $region15: #{multi_output_lstm_forward.1} parent=0 // pred_check_branch
    %23 = sbr.rel (0) target = $region17
  $region16: #{multi_output_lstm_forward.1} parent=0 // pred_region
    _
  $region17: #{multi_output_lstm_forward.1} parent=0 // pred_fallthru
    _
  // Predicated region
  $region18: #{multi_output_lstm_forward.1} parent=0 // pred_check
    _
  $region19: #{multi_output_lstm_forward.1} parent=0 // pred_check_branch
    %25 = sbr.rel (0) target = $region21
  $region20: #{multi_output_lstm_forward.1} parent=0 // pred_region
    _
  $region21: #{multi_output_lstm_forward.1} parent=0 // pred_fallthru
    _
  // Predicated region
  $region22: #{multi_output_lstm_forward.1} parent=0 // pred_check
    _
  $region23: #{multi_output_lstm_forward.1} parent=0 // pred_check_branch
    %27 = sbr.rel (0) target = $region25
  $region24: #{multi_output_lstm_forward.1} parent=0 // pred_region
    _
  $region25: #{multi_output_lstm_forward.1} parent=0 // pred_fallthru
    _
  // Predicated region
  $region26: #{multi_output_lstm_forward.1} parent=0 // pred_check
    _
  $region27: #{multi_output_lstm_forward.1} parent=0 // pred_check_branch
    %29 = sbr.rel (0) target = $region29
  $region28: #{multi_output_lstm_forward.1} parent=0 // pred_region
    _
  $region29: #{multi_output_lstm_forward.1} parent=0 // pred_fallthru
    _
  // Predicated region
  $region30: #{multi_output_lstm_forward.1} parent=0 // pred_check
    _
  $region31: #{multi_output_lstm_forward.1} parent=0 // pred_check_branch
    %31 = sbr.rel (0) target = $region33
  $region32: #{multi_output_lstm_forward.1} parent=0 // pred_region
    _
  $region33: #{multi_output_lstm_forward.1} parent=0 // pred_fallthru
    _
  // Predicated region
  $region34: #{multi_output_lstm_forward.1} parent=0 // pred_check
    _
  $region35: #{multi_output_lstm_forward.1} parent=0 // pred_check_branch
    %33 = sbr.rel (0) target = $region37
  $region36: #{multi_output_lstm_forward.1} parent=0 // pred_region
    _
  $region37: #{multi_output_lstm_forward.1} parent=0 // pred_fallthru
    _
  // Predicated region
  $region38: #{multi_output_lstm_forward.1} parent=0 // pred_check
    _
  $region39: #{multi_output_lstm_forward.1} parent=0 // pred_check_branch
    %35 = sbr.rel (0) target = $region41
  $region40: #{multi_output_lstm_forward.1} parent=0 // pred_region
    _
  $region41: #{multi_output_lstm_forward.1} parent=0 // pred_fallthru
    _
  // Predicated region
  $region42: #{multi_output_lstm_forward.1} parent=0 // pred_check
    _
  $region43: #{multi_output_lstm_forward.1} parent=0 // pred_check_branch
    %37 = sbr.rel (0) target = $region45
  $region44: #{multi_output_lstm_forward.1} parent=0 // pred_region
    _
  $region45: #{multi_output_lstm_forward.1} parent=0 // pred_fallthru
    _
  %v38 = vld [vmem:[%s2] sm:$0xff]
  %v39 = vld [vmem:[%s2 + $0x8] sm:$0xff]
  %v40 = vld [vmem:[%s2 + $0x10] sm:$0xff]
  %v41 = vld [vmem:[%s2 + $0x18] sm:$0xff]
  %v42 = vld [vmem:[%s4] sm:$0xff]
  %v43 = vld [vmem:[%s4 + $0x8] sm:$0xff]
  %v44 = vld [vmem:[%s4 + $0x10] sm:$0xff]
  %v45 = vld [vmem:[%s4 + $0x18] sm:$0xff]
  %v46 = vld [vmem:[%s5] sm:$0xff]
  %v47 = vld [vmem:[%s5 + $0x8] sm:$0xff]
  %v48 = vld [vmem:[%s5 + $0x10] sm:$0xff]
  %v49 = vld [vmem:[%s5 + $0x18] sm:$0xff]
  %v50 = vld [vmem:[%s0] sm:$0xff]
  %v51 = vld [vmem:[%s0 + $0x8] sm:$0xff]
  %v52 = vld [vmem:[%s0 + $0x10] sm:$0xff]
  %v53 = vld [vmem:[%s0 + $0x18] sm:$0xff]
  %v54 = vld [vmem:[%s0 + $0x20] sm:$0xff]
  %v55 = vld [vmem:[%s0 + $0x28] sm:$0xff]
  %v56 = vld [vmem:[%s0 + $0x30] sm:$0xff]
  %v57 = vld [vmem:[%s0 + $0x38] sm:$0xff]
  %v58 = vld [vmem:[%s1] sm:$0xff]
  %v59 = vld [vmem:[%s1 + $0x8] sm:$0xff]
  %v60 = vld [vmem:[%s3] sm:$0x1]
  %v62 = vlaneseq
  %v63 = vshrl.u32 %v62, 7
  %v64 = vsub.s32 0, %v63
  %v65 = vrot.slane %v60, %v64
  %vm67 = vcmask 130048
  %v69 = vsel %vm67, %v50, 0
  %v72 = vsel %vm67, %v51, 0
  %v75 = vsel %vm67, %v52, 0
  %v78 = vsel %vm67, %v53, 0
  %v81 = vsel %vm67, %v54, 0
  %v84 = vsel %vm67, %v55, 0
  %v87 = vsel %vm67, %v56, 0
  %v90 = vsel %vm67, %v57, 0
  %92 = vmatprep.subr.mxu0 0.0
  %93 = vmatpush1.msra.mxu0 0.0
  %94 = vmatprep.subr.mxu0 0.0
  %95 = vmatpush1.msra.mxu0 0.0
  %96 = vmatprep.subr.mxu0 0.0
  %97 = vmatpush1.msra.mxu0 0.0
  %98 = vmatprep.subr.mxu0 0.0
  %99 = vmatpush1.msra.mxu0 0.0
  %100 = vmatprep.subr.mxu0 0.0
  %101 = vmatpush1.msra.mxu0 0.0
  %102 = vmatprep.subr.mxu0 0.0
  %103 = vmatpush1.msra.mxu0 0.0
  %104 = vmatprep.subr.mxu0 0.0
  %105 = vmatpush1.msra.mxu0 0.0
  %106 = vmatprep.subr.mxu0 0.0
  %107 = vmatpush1.msra.mxu0 0.0
  %108 = vmatprep.subr.mxu0 0.0
  %109 = vmatpush1.msra.mxu0 0.0
  %110 = vmatprep.subr.mxu0 0.0
  %111 = vmatpush1.msra.mxu0 0.0
  %112 = vmatprep.subr.mxu0 0.0
  %113 = vmatpush1.msra.mxu0 0.0
  %114 = vmatprep.subr.mxu0 0.0
  %115 = vmatpush1.msra.mxu0 0.0
  %116 = vmatprep.subr.mxu0 0.0
  %117 = vmatpush1.msra.mxu0 0.0
  %118 = vmatprep.subr.mxu0 0.0
  %119 = vmatpush1.msra.mxu0 0.0
  %120 = vmatprep.subr.mxu0 0.0
  %121 = vmatpush1.msra.mxu0 %v59
  %122 = vmatprep.subr.mxu0 0.0
  %123 = vmatpush1.msra.mxu0 %v58
  %124 = vmatprep.subr.mxu0 0.0
  %125 = vmatpush2.msra.mxu0 0.0
  %126 = vmatprep.subr.mxu0 0.0
  %127 = vmatpush2.msra.mxu0 0.0
  %128 = vmatprep.subr.mxu0 0.0
  %129 = vmatpush2.msra.mxu0 0.0
  %130 = vmatprep.subr.mxu0 0.0
  %131 = vmatpush2.msra.mxu0 0.0
  %132 = vmatprep.subr.mxu0 0.0
  %133 = vmatpush2.msra.mxu0 0.0
  %134 = vmatprep.subr.mxu0 0.0
  %135 = vmatpush2.msra.mxu0 0.0
  %136 = vmatprep.subr.mxu0 0.0
  %137 = vmatpush2.msra.mxu0 0.0
  %138 = vmatprep.subr.mxu0 0.0
  %139 = vmatpush2.msra.mxu0 0.0
  %140 = vmatprep.subr.mxu0 0.0
  %141 = vmatpush2.msra.mxu0 0.0
  %142 = vmatprep.subr.mxu0 0.0
  %143 = vmatpush2.msra.mxu0 0.0
  %144 = vmatprep.subr.mxu0 0.0
  %145 = vmatpush2.msra.mxu0 0.0
  %146 = vmatprep.subr.mxu0 0.0
  %147 = vmatpush2.msra.mxu0 0.0
  %148 = vmatprep.subr.mxu0 0.0
  %149 = vmatpush2.msra.mxu0 0.0
  %150 = vmatprep.subr.mxu0 0.0
  %151 = vmatpush2.msra.mxu0 0.0
  %152 = vmatprep.subr.mxu0 0.0
  %153 = vmatpush2.msra.mxu0 0.0
  %154 = vmatprep.subr.mxu0 0.0
  %155 = vmatpush2.msra.mxu0 0.0
  %156 = vmatprep.mubr.f32.mxu0 0.0
  %157 = vmatmul.mubr.f32.gmra.mxu0 %v69
  %v158 = vpop.f32.mrf.mxu0
  %v159 = vadd.f32 %v65, %v158
  %v160 = vpop.f32.mrf.mxu0
  %161 = vmatprep.mubr.f32.mxu0 0.0
  %162 = vmatmul.mubr.f32.gmra.mxu0 %v72
  %v163 = vpop.f32.mrf.mxu0
  %v164 = vadd.f32 %v65, %v163
  %v165 = vpop.f32.mrf.mxu0
  %166 = vmatprep.mubr.f32.mxu0 0.0
  %167 = vmatmul.mubr.f32.gmra.mxu0 %v75
  %v168 = vpop.f32.mrf.mxu0
  %v169 = vadd.f32 %v65, %v168
  %v170 = vpop.f32.mrf.mxu0
  %171 = vmatprep.mubr.f32.mxu0 0.0
  %172 = vmatmul.mubr.f32.gmra.mxu0 %v78
  %v173 = vpop.f32.mrf.mxu0
  %v174 = vadd.f32 %v65, %v173
  %v175 = vpop.f32.mrf.mxu0
  %176 = vmatprep.mubr.f32.mxu0 0.0
  %177 = vmatmul.mubr.f32.gmra.mxu0 %v81
  %v178 = vpop.f32.mrf.mxu0
  %v179 = vadd.f32 %v65, %v178
  %v180 = vpop.f32.mrf.mxu0
  %181 = vmatprep.mubr.f32.mxu0 0.0
  %182 = vmatmul.mubr.f32.gmra.mxu0 %v84
  %v183 = vpop.f32.mrf.mxu0
  %v184 = vadd.f32 %v65, %v183
  %v185 = vpop.f32.mrf.mxu0
  %186 = vmatprep.mubr.f32.mxu0 0.0
  %187 = vmatmul.mubr.f32.gmra.mxu0 %v87
  %v188 = vpop.f32.mrf.mxu0
  %v189 = vadd.f32 %v65, %v188
  %v190 = vpop.f32.mrf.mxu0
  %191 = vmatprep.mubr.f32.mxu0 0.0
  %192 = vmatmul.mubr.f32.gmra.mxu0 %v90
  %v193 = vpop.f32.mrf.mxu0
  %v194 = vadd.f32 %v65, %v193
  %v195 = vpop.f32.mrf.mxu0
  %196 = vdwg.mxu0
  %v197 = vld [vmem:[%s6] sm:$0x1]
  %v199 = vlaneseq
  %v200 = vshrl.u32 %v199, 7
  %v201 = vsub.s32 0, %v200
  %v202 = vrot.slane %v197, %v201
  %vm204 = vcmask 261120
  %v206 = vsel %vm204, 0.0, 0
  %208 = vmatprep.subr.mxu0 0.0
  %209 = vmatpush1.msra.mxu0 0.0
  %210 = vmatprep.subr.mxu0 0.0
  %211 = vmatpush1.msra.mxu0 0.0
  %212 = vmatprep.subr.mxu0 0.0
  %213 = vmatpush1.msra.mxu0 0.0
  %214 = vmatprep.subr.mxu0 0.0
  %215 = vmatpush1.msra.mxu0 0.0
  %216 = vmatprep.subr.mxu0 0.0
  %217 = vmatpush1.msra.mxu0 0.0
  %218 = vmatprep.subr.mxu0 0.0
  %219 = vmatpush1.msra.mxu0 0.0
  %220 = vmatprep.subr.mxu0 0.0
  %221 = vmatpush1.msra.mxu0 0.0
  %222 = vmatprep.subr.mxu0 0.0
  %223 = vmatpush1.msra.mxu0 0.0
  %224 = vmatprep.subr.mxu0 0.0
  %225 = vmatpush1.msra.mxu0 0.0
  %226 = vmatprep.subr.mxu0 0.0
  %227 = vmatpush1.msra.mxu0 0.0
  %228 = vmatprep.subr.mxu0 0.0
  %229 = vmatpush1.msra.mxu0 0.0
  %230 = vmatprep.subr.mxu0 0.0
  %231 = vmatpush1.msra.mxu0 0.0
  %232 = vmatprep.subr.mxu0 0.0
  %233 = vmatpush1.msra.mxu0 %v41
  %234 = vmatprep.subr.mxu0 0.0
  %235 = vmatpush1.msra.mxu0 %v40
  %236 = vmatprep.subr.mxu0 0.0
  %237 = vmatpush1.msra.mxu0 %v39
  %238 = vmatprep.subr.mxu0 0.0
  %239 = vmatpush1.msra.mxu0 %v38
  %240 = vmatprep.subr.mxu0 0.0
  %241 = vmatpush2.msra.mxu0 0.0
  %242 = vmatprep.subr.mxu0 0.0
  %243 = vmatpush2.msra.mxu0 0.0
  %244 = vmatprep.subr.mxu0 0.0
  %245 = vmatpush2.msra.mxu0 0.0
  %246 = vmatprep.subr.mxu0 0.0
  %247 = vmatpush2.msra.mxu0 0.0
  %248 = vmatprep.subr.mxu0 0.0
  %249 = vmatpush2.msra.mxu0 0.0
  %250 = vmatprep.subr.mxu0 0.0
  %251 = vmatpush2.msra.mxu0 0.0
  %252 = vmatprep.subr.mxu0 0.0
  %253 = vmatpush2.msra.mxu0 0.0
  %254 = vmatprep.subr.mxu0 0.0
  %255 = vmatpush2.msra.mxu0 0.0
  %256 = vmatprep.subr.mxu0 0.0
  %257 = vmatpush2.msra.mxu0 0.0
  %258 = vmatprep.subr.mxu0 0.0
  %259 = vmatpush2.msra.mxu0 0.0
  %260 = vmatprep.subr.mxu0 0.0
  %261 = vmatpush2.msra.mxu0 0.0
  %262 = vmatprep.subr.mxu0 0.0
  %263 = vmatpush2.msra.mxu0 0.0
  %264 = vmatprep.subr.mxu0 0.0
  %265 = vmatpush2.msra.mxu0 0.0
  %266 = vmatprep.subr.mxu0 0.0
  %267 = vmatpush2.msra.mxu0 0.0
  %268 = vmatprep.subr.mxu0 0.0
  %269 = vmatpush2.msra.mxu0 0.0
  %270 = vmatprep.subr.mxu0 0.0
  %271 = vmatpush2.msra.mxu0 0.0
  %272 = vmatprep.mubr.f32.mxu0 0.0
  %273 = vmatmul.mubr.f32.gmra.mxu0 %v206
  %v274 = vpop.f32.mrf.mxu0
  %v275 = vadd.f32 0.0, %v274
  %v276 = vpop.f32.mrf.mxu0
  %277 = vdwg.mxu0
  %v278 = vadd.f32 %v159, %v275
  %v279 = vxor.u32 %v278, 2147483648
  %v280 = vmul.f32 %v279, 1.442695
  %v281 = vpow.pop %v280
  %v282 = vadd.f32 %v281, 1.0
  %v283 = vrcp.pop %v282
  %v284 = vmul.f32 1.0, %v283
  %v285 = vmul.f32 %v284, 2.0
  %v286 = vsub.f32 %v285, 1.0
  %v287 = vmul.f32 %v284, 0.0
  %289 = vrot.lane.b32.xlu0 %v286, 64
  %v290 = vpop.permute.xlu0 %289
  %v292 = vmul.f32 %v284, %v290
  %294 = vrot.lane.b32.xlu0 %v292, 32
  %v295 = vpop.permute.xlu0 %294
  %v297 = vadd.f32 %v287, %v295
  %v298 = vtanh.pop %v297
  %300 = vrot.lane.b32.xlu0 %v298, 64
  %v301 = vpop.permute.xlu0 %300
  %v303 = vmul.f32 %v284, %v301
  %304 = vmatprep.subr.mxu0 0.0
  %305 = vmatpush1.msra.mxu0 0.0
  %306 = vmatprep.subr.mxu0 0.0
  %307 = vmatpush1.msra.mxu0 0.0
  %308 = vmatprep.subr.mxu0 0.0
  %309 = vmatpush1.msra.mxu0 0.0
  %310 = vmatprep.subr.mxu0 0.0
  %311 = vmatpush1.msra.mxu0 0.0
  %312 = vmatprep.subr.mxu0 0.0
  %313 = vmatpush1.msra.mxu0 0.0
  %314 = vmatprep.subr.mxu0 0.0
  %315 = vmatpush1.msra.mxu0 0.0
  %316 = vmatprep.subr.mxu0 0.0
  %317 = vmatpush1.msra.mxu0 0.0
  %318 = vmatprep.subr.mxu0 0.0
  %319 = vmatpush1.msra.mxu0 0.0
  %320 = vmatprep.subr.mxu0 0.0
  %321 = vmatpush1.msra.mxu0 0.0
  %322 = vmatprep.subr.mxu0 0.0
  %323 = vmatpush1.msra.mxu0 0.0
  %324 = vmatprep.subr.mxu0 0.0
  %325 = vmatpush1.msra.mxu0 0.0
  %326 = vmatprep.subr.mxu0 0.0
  %327 = vmatpush1.msra.mxu0 0.0
  %328 = vmatprep.subr.mxu0 0.0
  %329 = vmatpush1.msra.mxu0 %v49
  %330 = vmatprep.subr.mxu0 0.0
  %331 = vmatpush1.msra.mxu0 %v48
  %332 = vmatprep.subr.mxu0 0.0
  %333 = vmatpush1.msra.mxu0 %v47
  %334 = vmatprep.subr.mxu0 0.0
  %335 = vmatpush1.msra.mxu0 %v46
  %336 = vmatprep.subr.mxu0 0.0
  %337 = vmatpush2.msra.mxu0 0.0
  %338 = vmatprep.subr.mxu0 0.0
  %339 = vmatpush2.msra.mxu0 0.0
  %340 = vmatprep.subr.mxu0 0.0
  %341 = vmatpush2.msra.mxu0 0.0
  %342 = vmatprep.subr.mxu0 0.0
  %343 = vmatpush2.msra.mxu0 0.0
  %344 = vmatprep.subr.mxu0 0.0
  %345 = vmatpush2.msra.mxu0 0.0
  %346 = vmatprep.subr.mxu0 0.0
  %347 = vmatpush2.msra.mxu0 0.0
  %348 = vmatprep.subr.mxu0 0.0
  %349 = vmatpush2.msra.mxu0 0.0
  %350 = vmatprep.subr.mxu0 0.0
  %351 = vmatpush2.msra.mxu0 0.0
  %352 = vmatprep.subr.mxu0 0.0
  %353 = vmatpush2.msra.mxu0 0.0
  %354 = vmatprep.subr.mxu0 0.0
  %355 = vmatpush2.msra.mxu0 0.0
  %356 = vmatprep.subr.mxu0 0.0
  %357 = vmatpush2.msra.mxu0 0.0
  %358 = vmatprep.subr.mxu0 0.0
  %359 = vmatpush2.msra.mxu0 0.0
  %360 = vmatprep.subr.mxu0 0.0
  %361 = vmatpush2.msra.mxu0 0.0
  %362 = vmatprep.subr.mxu0 0.0
  %363 = vmatpush2.msra.mxu0 0.0
  %364 = vmatprep.subr.mxu0 0.0
  %365 = vmatpush2.msra.mxu0 0.0
  %366 = vmatprep.subr.mxu0 0.0
  %367 = vmatpush2.msra.mxu0 0.0
  %368 = vmatprep.mubr.f32.mxu0 0.0
  %369 = vmatmul.mubr.f32.gmra.mxu0 %v206
  %v370 = vpop.f32.mrf.mxu0
  %v371 = vadd.f32 0.0, %v370
  %v372 = vpop.f32.mrf.mxu0
  %373 = vdwg.mxu0
  %375 = vrot.lane.b32.xlu0 %v303, 32
  %v376 = vpop.permute.xlu0 %375
  %v377 = vsel %vm204, %v376, 0
  %379 = vmatprep.subr.mxu0 0.0
  %380 = vmatpush1.msra.mxu0 0.0
  %381 = vmatprep.subr.mxu0 0.0
  %382 = vmatpush1.msra.mxu0 0.0
  %383 = vmatprep.subr.mxu0 0.0
  %384 = vmatpush1.msra.mxu0 0.0
  %385 = vmatprep.subr.mxu0 0.0
  %386 = vmatpush1.msra.mxu0 0.0
  %387 = vmatprep.subr.mxu0 0.0
  %388 = vmatpush1.msra.mxu0 0.0
  %389 = vmatprep.subr.mxu0 0.0
  %390 = vmatpush1.msra.mxu0 0.0
  %391 = vmatprep.subr.mxu0 0.0
  %392 = vmatpush1.msra.mxu0 0.0
  %393 = vmatprep.subr.mxu0 0.0
  %394 = vmatpush1.msra.mxu0 0.0
  %395 = vmatprep.subr.mxu0 0.0
  %396 = vmatpush1.msra.mxu0 0.0
  %397 = vmatprep.subr.mxu0 0.0
  %398 = vmatpush1.msra.mxu0 0.0
  %399 = vmatprep.subr.mxu0 0.0
  %400 = vmatpush1.msra.mxu0 0.0
  %401 = vmatprep.subr.mxu0 0.0
  %402 = vmatpush1.msra.mxu0 0.0
  %403 = vmatprep.subr.mxu0 0.0
  %404 = vmatpush1.msra.mxu0 %v45
  %405 = vmatprep.subr.mxu0 0.0
  %406 = vmatpush1.msra.mxu0 %v44
  %407 = vmatprep.subr.mxu0 0.0
  %408 = vmatpush1.msra.mxu0 %v43
  %409 = vmatprep.subr.mxu0 0.0
  %410 = vmatpush1.msra.mxu0 %v42
  %411 = vmatprep.subr.mxu0 0.0
  %412 = vmatpush2.msra.mxu0 0.0
  %413 = vmatprep.subr.mxu0 0.0
  %414 = vmatpush2.msra.mxu0 0.0
  %415 = vmatprep.subr.mxu0 0.0
  %416 = vmatpush2.msra.mxu0 0.0
  %417 = vmatprep.subr.mxu0 0.0
  %418 = vmatpush2.msra.mxu0 0.0
  %419 = vmatprep.subr.mxu0 0.0
  %420 = vmatpush2.msra.mxu0 0.0
  %421 = vmatprep.subr.mxu0 0.0
  %422 = vmatpush2.msra.mxu0 0.0
  %423 = vmatprep.subr.mxu0 0.0
  %424 = vmatpush2.msra.mxu0 0.0
  %425 = vmatprep.subr.mxu0 0.0
  %426 = vmatpush2.msra.mxu0 0.0
  %427 = vmatprep.subr.mxu0 0.0
  %428 = vmatpush2.msra.mxu0 0.0
  %429 = vmatprep.subr.mxu0 0.0
  %430 = vmatpush2.msra.mxu0 0.0
  %431 = vmatprep.subr.mxu0 0.0
  %432 = vmatpush2.msra.mxu0 0.0
  %433 = vmatprep.subr.mxu0 0.0
  %434 = vmatpush2.msra.mxu0 0.0
  %435 = vmatprep.subr.mxu0 0.0
  %436 = vmatpush2.msra.mxu0 0.0
  %437 = vmatprep.subr.mxu0 0.0
  %438 = vmatpush2.msra.mxu0 0.0
  %439 = vmatprep.subr.mxu0 0.0
  %440 = vmatpush2.msra.mxu0 0.0
  %441 = vmatprep.subr.mxu0 0.0
  %442 = vmatpush2.msra.mxu0 0.0
  %443 = vmatprep.mubr.f32.mxu0 0.0
  %444 = vmatmul.mubr.f32.gmra.mxu0 %v377
  %v445 = vpop.f32.mrf.mxu0
  %v446 = vadd.f32 %v371, %v445
  %v447 = vpop.f32.mrf.mxu0
  %448 = vdwg.mxu0
  %v449 = vadd.f32 %v446, %v202
  %v450 = vxor.u32 %v449, 2147483648
  %v451 = vmul.f32 %v450, 1.442695
  %v452 = vpow.pop %v451
  %v453 = vadd.f32 %v452, 1.0
  %v454 = vrcp.pop %v453
  %v455 = vmul.f32 1.0, %v454
  %v456 = vmul.f32 %v455, 2.0
  %v457 = vsub.f32 %v456, 1.0
  %v458 = vmul.f32 %v455, 0.0
  %460 = vrot.lane.b32.xlu0 %v457, 64
  %v461 = vpop.permute.xlu0 %460
  %v463 = vmul.f32 %v455, %v461
  %465 = vrot.lane.b32.xlu0 %v463, 32
  %v466 = vpop.permute.xlu0 %465
  %v468 = vadd.f32 %v458, %v466
  %v469 = vtanh.pop %v468
  %471 = vrot.lane.b32.xlu0 %v469, 64
  %v472 = vpop.permute.xlu0 %471
  %v474 = vmul.f32 %v455, %v472
  %475 = vmatprep.subr.mxu0 0.0
  %476 = vmatpush1.msra.mxu0 0.0
  %477 = vmatprep.subr.mxu0 0.0
  %478 = vmatpush1.msra.mxu0 0.0
  %479 = vmatprep.subr.mxu0 0.0
  %480 = vmatpush1.msra.mxu0 0.0
  %481 = vmatprep.subr.mxu0 0.0
  %482 = vmatpush1.msra.mxu0 0.0
  %483 = vmatprep.subr.mxu0 0.0
  %484 = vmatpush1.msra.mxu0 0.0
  %485 = vmatprep.subr.mxu0 0.0
  %486 = vmatpush1.msra.mxu0 0.0
  %487 = vmatprep.subr.mxu0 0.0
  %488 = vmatpush1.msra.mxu0 0.0
  %489 = vmatprep.subr.mxu0 0.0
  %490 = vmatpush1.msra.mxu0 0.0
  %491 = vmatprep.subr.mxu0 0.0
  %492 = vmatpush1.msra.mxu0 0.0
  %493 = vmatprep.subr.mxu0 0.0
  %494 = vmatpush1.msra.mxu0 0.0
  %495 = vmatprep.subr.mxu0 0.0
  %496 = vmatpush1.msra.mxu0 0.0
  %497 = vmatprep.subr.mxu0 0.0
  %498 = vmatpush1.msra.mxu0 0.0
  %499 = vmatprep.subr.mxu0 0.0
  %500 = vmatpush1.msra.mxu0 %v41
  %501 = vmatprep.subr.mxu0 0.0
  %502 = vmatpush1.msra.mxu0 %v40
  %503 = vmatprep.subr.mxu0 0.0
  %504 = vmatpush1.msra.mxu0 %v39
  %505 = vmatprep.subr.mxu0 0.0
  %506 = vmatpush1.msra.mxu0 %v38
  %507 = vmatprep.subr.mxu0 0.0
  %508 = vmatpush2.msra.mxu0 0.0
  %509 = vmatprep.subr.mxu0 0.0
  %510 = vmatpush2.msra.mxu0 0.0
  %511 = vmatprep.subr.mxu0 0.0
  %512 = vmatpush2.msra.mxu0 0.0
  %513 = vmatprep.subr.mxu0 0.0
  %514 = vmatpush2.msra.mxu0 0.0
  %515 = vmatprep.subr.mxu0 0.0
  %516 = vmatpush2.msra.mxu0 0.0
  %517 = vmatprep.subr.mxu0 0.0
  %518 = vmatpush2.msra.mxu0 0.0
  %519 = vmatprep.subr.mxu0 0.0
  %520 = vmatpush2.msra.mxu0 0.0
  %521 = vmatprep.subr.mxu0 0.0
  %522 = vmatpush2.msra.mxu0 0.0
  %523 = vmatprep.subr.mxu0 0.0
  %524 = vmatpush2.msra.mxu0 0.0
  %525 = vmatprep.subr.mxu0 0.0
  %526 = vmatpush2.msra.mxu0 0.0
  %527 = vmatprep.subr.mxu0 0.0
  %528 = vmatpush2.msra.mxu0 0.0
  %529 = vmatprep.subr.mxu0 0.0
  %530 = vmatpush2.msra.mxu0 0.0
  %531 = vmatprep.subr.mxu0 0.0
  %532 = vmatpush2.msra.mxu0 0.0
  %533 = vmatprep.subr.mxu0 0.0
  %534 = vmatpush2.msra.mxu0 0.0
  %535 = vmatprep.subr.mxu0 0.0
  %536 = vmatpush2.msra.mxu0 0.0
  %537 = vmatprep.subr.mxu0 0.0
  %538 = vmatpush2.msra.mxu0 0.0
  %539 = vmatprep.mubr.f32.mxu0 0.0
  %540 = vmatmul.mubr.f32.gmra.mxu0 %v377
  %v541 = vpop.f32.mrf.mxu0
  %v542 = vadd.f32 0.0, %v541
  %v543 = vpop.f32.mrf.mxu0
  %544 = vdwg.mxu0
  %v545 = vadd.f32 %v164, %v542
  %v546 = vxor.u32 %v545, 2147483648
  %v547 = vmul.f32 %v546, 1.442695
  %v548 = vpow.pop %v547
  %v549 = vadd.f32 %v548, 1.0
  %v550 = vrcp.pop %v549
  %v551 = vmul.f32 1.0, %v550
  %v552 = vmul.f32 %v551, 2.0
  %v553 = vsub.f32 %v552, 1.0
  %v554 = vmul.f32 %v551, %v297
  %556 = vrot.lane.b32.xlu0 %v553, 64
  %v557 = vpop.permute.xlu0 %556
  %v559 = vmul.f32 %v551, %v557
  %561 = vrot.lane.b32.xlu0 %v559, 32
  %v562 = vpop.permute.xlu0 %561
  %v564 = vadd.f32 %v554, %v562
  %v565 = vtanh.pop %v564
  %567 = vrot.lane.b32.xlu0 %v565, 64
  %v568 = vpop.permute.xlu0 %567
  %v570 = vmul.f32 %v551, %v568
  %572 = vrot.lane.b32.xlu0 %v474, 32
  %v573 = vpop.permute.xlu0 %572
  %v574 = vsel %vm204, %v573, 0
  %576 = vmatprep.subr.mxu0 0.0
  %577 = vmatpush1.msra.mxu0 0.0
  %578 = vmatprep.subr.mxu0 0.0
  %579 = vmatpush1.msra.mxu0 0.0
  %580 = vmatprep.subr.mxu0 0.0
  %581 = vmatpush1.msra.mxu0 0.0
  %582 = vmatprep.subr.mxu0 0.0
  %583 = vmatpush1.msra.mxu0 0.0
  %584 = vmatprep.subr.mxu0 0.0
  %585 = vmatpush1.msra.mxu0 0.0
  %586 = vmatprep.subr.mxu0 0.0
  %587 = vmatpush1.msra.mxu0 0.0
  %588 = vmatprep.subr.mxu0 0.0
  %589 = vmatpush1.msra.mxu0 0.0
  %590 = vmatprep.subr.mxu0 0.0
  %591 = vmatpush1.msra.mxu0 0.0
  %592 = vmatprep.subr.mxu0 0.0
  %593 = vmatpush1.msra.mxu0 0.0
  %594 = vmatprep.subr.mxu0 0.0
  %595 = vmatpush1.msra.mxu0 0.0
  %596 = vmatprep.subr.mxu0 0.0
  %597 = vmatpush1.msra.mxu0 0.0
  %598 = vmatprep.subr.mxu0 0.0
  %599 = vmatpush1.msra.mxu0 0.0
  %600 = vmatprep.subr.mxu0 0.0
  %601 = vmatpush1.msra.mxu0 %v49
  %602 = vmatprep.subr.mxu0 0.0
  %603 = vmatpush1.msra.mxu0 %v48
  %604 = vmatprep.subr.mxu0 0.0
  %605 = vmatpush1.msra.mxu0 %v47
  %606 = vmatprep.subr.mxu0 0.0
  %607 = vmatpush1.msra.mxu0 %v46
  %608 = vmatprep.subr.mxu0 0.0
  %609 = vmatpush2.msra.mxu0 0.0
  %610 = vmatprep.subr.mxu0 0.0
  %611 = vmatpush2.msra.mxu0 0.0
  %612 = vmatprep.subr.mxu0 0.0
  %613 = vmatpush2.msra.mxu0 0.0
  %614 = vmatprep.subr.mxu0 0.0
  %615 = vmatpush2.msra.mxu0 0.0
  %616 = vmatprep.subr.mxu0 0.0
  %617 = vmatpush2.msra.mxu0 0.0
  %618 = vmatprep.subr.mxu0 0.0
  %619 = vmatpush2.msra.mxu0 0.0
  %620 = vmatprep.subr.mxu0 0.0
  %621 = vmatpush2.msra.mxu0 0.0
  %622 = vmatprep.subr.mxu0 0.0
  %623 = vmatpush2.msra.mxu0 0.0
  %624 = vmatprep.subr.mxu0 0.0
  %625 = vmatpush2.msra.mxu0 0.0
  %626 = vmatprep.subr.mxu0 0.0
  %627 = vmatpush2.msra.mxu0 0.0
  %628 = vmatprep.subr.mxu0 0.0
  %629 = vmatpush2.msra.mxu0 0.0
  %630 = vmatprep.subr.mxu0 0.0
  %631 = vmatpush2.msra.mxu0 0.0
  %632 = vmatprep.subr.mxu0 0.0
  %633 = vmatpush2.msra.mxu0 0.0
  %634 = vmatprep.subr.mxu0 0.0
  %635 = vmatpush2.msra.mxu0 0.0
  %636 = vmatprep.subr.mxu0 0.0
  %637 = vmatpush2.msra.mxu0 0.0
  %638 = vmatprep.subr.mxu0 0.0
  %639 = vmatpush2.msra.mxu0 0.0
  %640 = vmatprep.mubr.f32.mxu0 0.0
  %641 = vmatmul.mubr.f32.gmra.mxu0 %v574
  %v642 = vpop.f32.mrf.mxu0
  %v643 = vadd.f32 0.0, %v642
  %v644 = vpop.f32.mrf.mxu0
  %645 = vdwg.mxu0
  %647 = vrot.lane.b32.xlu0 %v570, 32
  %v648 = vpop.permute.xlu0 %647
  %v649 = vsel %vm204, %v648, 0
  %651 = vmatprep.subr.mxu0 0.0
  %652 = vmatpush1.msra.mxu0 0.0
  %653 = vmatprep.subr.mxu0 0.0
  %654 = vmatpush1.msra.mxu0 0.0
  %655 = vmatprep.subr.mxu0 0.0
  %656 = vmatpush1.msra.mxu0 0.0
  %657 = vmatprep.subr.mxu0 0.0
  %658 = vmatpush1.msra.mxu0 0.0
  %659 = vmatprep.subr.mxu0 0.0
  %660 = vmatpush1.msra.mxu0 0.0
  %661 = vmatprep.subr.mxu0 0.0
  %662 = vmatpush1.msra.mxu0 0.0
  %663 = vmatprep.subr.mxu0 0.0
  %664 = vmatpush1.msra.mxu0 0.0
  %665 = vmatprep.subr.mxu0 0.0
  %666 = vmatpush1.msra.mxu0 0.0
  %667 = vmatprep.subr.mxu0 0.0
  %668 = vmatpush1.msra.mxu0 0.0
  %669 = vmatprep.subr.mxu0 0.0
  %670 = vmatpush1.msra.mxu0 0.0
  %671 = vmatprep.subr.mxu0 0.0
  %672 = vmatpush1.msra.mxu0 0.0
  %673 = vmatprep.subr.mxu0 0.0
  %674 = vmatpush1.msra.mxu0 0.0
  %675 = vmatprep.subr.mxu0 0.0
  %676 = vmatpush1.msra.mxu0 %v45
  %677 = vmatprep.subr.mxu0 0.0
  %678 = vmatpush1.msra.mxu0 %v44
  %679 = vmatprep.subr.mxu0 0.0
  %680 = vmatpush1.msra.mxu0 %v43
  %681 = vmatprep.subr.mxu0 0.0
  %682 = vmatpush1.msra.mxu0 %v42
  %683 = vmatprep.subr.mxu0 0.0
  %684 = vmatpush2.msra.mxu0 0.0
  %685 = vmatprep.subr.mxu0 0.0
  %686 = vmatpush2.msra.mxu0 0.0
  %687 = vmatprep.subr.mxu0 0.0
  %688 = vmatpush2.msra.mxu0 0.0
  %689 = vmatprep.subr.mxu0 0.0
  %690 = vmatpush2.msra.mxu0 0.0
  %691 = vmatprep.subr.mxu0 0.0
  %692 = vmatpush2.msra.mxu0 0.0
  %693 = vmatprep.subr.mxu0 0.0
  %694 = vmatpush2.msra.mxu0 0.0
  %695 = vmatprep.subr.mxu0 0.0
  %696 = vmatpush2.msra.mxu0 0.0
  %697 = vmatprep.subr.mxu0 0.0
  %698 = vmatpush2.msra.mxu0 0.0
  %699 = vmatprep.subr.mxu0 0.0
  %700 = vmatpush2.msra.mxu0 0.0
  %701 = vmatprep.subr.mxu0 0.0
  %702 = vmatpush2.msra.mxu0 0.0
  %703 = vmatprep.subr.mxu0 0.0
  %704 = vmatpush2.msra.mxu0 0.0
  %705 = vmatprep.subr.mxu0 0.0
  %706 = vmatpush2.msra.mxu0 0.0
  %707 = vmatprep.subr.mxu0 0.0
  %708 = vmatpush2.msra.mxu0 0.0
  %709 = vmatprep.subr.mxu0 0.0
  %710 = vmatpush2.msra.mxu0 0.0
  %711 = vmatprep.subr.mxu0 0.0
  %712 = vmatpush2.msra.mxu0 0.0
  %713 = vmatprep.subr.mxu0 0.0
  %714 = vmatpush2.msra.mxu0 0.0
  %715 = vmatprep.mubr.f32.mxu0 0.0
  %716 = vmatmul.mubr.f32.gmra.mxu0 %v649
  %v717 = vpop.f32.mrf.mxu0
  %v718 = vadd.f32 %v643, %v717
  %v719 = vpop.f32.mrf.mxu0
  %720 = vdwg.mxu0
  %v721 = vadd.f32 %v718, %v202
  %v722 = vxor.u32 %v721, 2147483648
  %v723 = vmul.f32 %v722, 1.442695
  %v724 = vpow.pop %v723
  %v725 = vadd.f32 %v724, 1.0
  %v726 = vrcp.pop %v725
  %v727 = vmul.f32 1.0, %v726
  %v728 = vmul.f32 %v727, 2.0
  %v729 = vsub.f32 %v728, 1.0
  %v730 = vmul.f32 %v727, %v468
  %732 = vrot.lane.b32.xlu0 %v729, 64
  %v733 = vpop.permute.xlu0 %732
  %v735 = vmul.f32 %v727, %v733
  %737 = vrot.lane.b32.xlu0 %v735, 32
  %v738 = vpop.permute.xlu0 %737
  %v740 = vadd.f32 %v730, %v738
  %v741 = vtanh.pop %v740
  %743 = vrot.lane.b32.xlu0 %v741, 64
  %v744 = vpop.permute.xlu0 %743
  %v746 = vmul.f32 %v727, %v744
  %747 = vmatprep.subr.mxu0 0.0
  %748 = vmatpush1.msra.mxu0 0.0
  %749 = vmatprep.subr.mxu0 0.0
  %750 = vmatpush1.msra.mxu0 0.0
  %751 = vmatprep.subr.mxu0 0.0
  %752 = vmatpush1.msra.mxu0 0.0
  %753 = vmatprep.subr.mxu0 0.0
  %754 = vmatpush1.msra.mxu0 0.0
  %755 = vmatprep.subr.mxu0 0.0
  %756 = vmatpush1.msra.mxu0 0.0
  %757 = vmatprep.subr.mxu0 0.0
  %758 = vmatpush1.msra.mxu0 0.0
  %759 = vmatprep.subr.mxu0 0.0
  %760 = vmatpush1.msra.mxu0 0.0
  %761 = vmatprep.subr.mxu0 0.0
  %762 = vmatpush1.msra.mxu0 0.0
  %763 = vmatprep.subr.mxu0 0.0
  %764 = vmatpush1.msra.mxu0 0.0
  %765 = vmatprep.subr.mxu0 0.0
  %766 = vmatpush1.msra.mxu0 0.0
  %767 = vmatprep.subr.mxu0 0.0
  %768 = vmatpush1.msra.mxu0 0.0
  %769 = vmatprep.subr.mxu0 0.0
  %770 = vmatpush1.msra.mxu0 0.0
  %771 = vmatprep.subr.mxu0 0.0
  %772 = vmatpush1.msra.mxu0 %v41
  %773 = vmatprep.subr.mxu0 0.0
  %774 = vmatpush1.msra.mxu0 %v40
  %775 = vmatprep.subr.mxu0 0.0
  %776 = vmatpush1.msra.mxu0 %v39
  %777 = vmatprep.subr.mxu0 0.0
  %778 = vmatpush1.msra.mxu0 %v38
  %779 = vmatprep.subr.mxu0 0.0
  %780 = vmatpush2.msra.mxu0 0.0
  %781 = vmatprep.subr.mxu0 0.0
  %782 = vmatpush2.msra.mxu0 0.0
  %783 = vmatprep.subr.mxu0 0.0
  %784 = vmatpush2.msra.mxu0 0.0
  %785 = vmatprep.subr.mxu0 0.0
  %786 = vmatpush2.msra.mxu0 0.0
  %787 = vmatprep.subr.mxu0 0.0
  %788 = vmatpush2.msra.mxu0 0.0
  %789 = vmatprep.subr.mxu0 0.0
  %790 = vmatpush2.msra.mxu0 0.0
  %791 = vmatprep.subr.mxu0 0.0
  %792 = vmatpush2.msra.mxu0 0.0
  %793 = vmatprep.subr.mxu0 0.0
  %794 = vmatpush2.msra.mxu0 0.0
  %795 = vmatprep.subr.mxu0 0.0
  %796 = vmatpush2.msra.mxu0 0.0
  %797 = vmatprep.subr.mxu0 0.0
  %798 = vmatpush2.msra.mxu0 0.0
  %799 = vmatprep.subr.mxu0 0.0
  %800 = vmatpush2.msra.mxu0 0.0
  %801 = vmatprep.subr.mxu0 0.0
  %802 = vmatpush2.msra.mxu0 0.0
  %803 = vmatprep.subr.mxu0 0.0
  %804 = vmatpush2.msra.mxu0 0.0
  %805 = vmatprep.subr.mxu0 0.0
  %806 = vmatpush2.msra.mxu0 0.0
  %807 = vmatprep.subr.mxu0 0.0
  %808 = vmatpush2.msra.mxu0 0.0
  %809 = vmatprep.subr.mxu0 0.0
  %810 = vmatpush2.msra.mxu0 0.0
  %811 = vmatprep.mubr.f32.mxu0 0.0
  %812 = vmatmul.mubr.f32.gmra.mxu0 %v649
  %v813 = vpop.f32.mrf.mxu0
  %v814 = vadd.f32 0.0, %v813
  %v815 = vpop.f32.mrf.mxu0
  %816 = vdwg.mxu0
  %v817 = vadd.f32 %v169, %v814
  %v818 = vxor.u32 %v817, 2147483648
  %v819 = vmul.f32 %v818, 1.442695
  %v820 = vpow.pop %v819
  %v821 = vadd.f32 %v820, 1.0
  %v822 = vrcp.pop %v821
  %v823 = vmul.f32 1.0, %v822
  %v824 = vmul.f32 %v823, 2.0
  %v825 = vsub.f32 %v824, 1.0
  %v826 = vmul.f32 %v823, %v564
  %828 = vrot.lane.b32.xlu0 %v825, 64
  %v829 = vpop.permute.xlu0 %828
  %v831 = vmul.f32 %v823, %v829
  %833 = vrot.lane.b32.xlu0 %v831, 32
  %v834 = vpop.permute.xlu0 %833
  %v836 = vadd.f32 %v826, %v834
  %v837 = vtanh.pop %v836
  %839 = vrot.lane.b32.xlu0 %v837, 64
  %v840 = vpop.permute.xlu0 %839
  %v842 = vmul.f32 %v823, %v840
  %844 = vrot.lane.b32.xlu0 %v746, 32
  %v845 = vpop.permute.xlu0 %844
  %v846 = vsel %vm204, %v845, 0
  %848 = vmatprep.subr.mxu0 0.0
  %849 = vmatpush1.msra.mxu0 0.0
  %850 = vmatprep.subr.mxu0 0.0
  %851 = vmatpush1.msra.mxu0 0.0
  %852 = vmatprep.subr.mxu0 0.0
  %853 = vmatpush1.msra.mxu0 0.0
  %854 = vmatprep.subr.mxu0 0.0
  %855 = vmatpush1.msra.mxu0 0.0
  %856 = vmatprep.subr.mxu0 0.0
  %857 = vmatpush1.msra.mxu0 0.0
  %858 = vmatprep.subr.mxu0 0.0
  %859 = vmatpush1.msra.mxu0 0.0
  %860 = vmatprep.subr.mxu0 0.0
  %861 = vmatpush1.msra.mxu0 0.0
  %862 = vmatprep.subr.mxu0 0.0
  %863 = vmatpush1.msra.mxu0 0.0
  %864 = vmatprep.subr.mxu0 0.0
  %865 = vmatpush1.msra.mxu0 0.0
  %866 = vmatprep.subr.mxu0 0.0
  %867 = vmatpush1.msra.mxu0 0.0
  %868 = vmatprep.subr.mxu0 0.0
  %869 = vmatpush1.msra.mxu0 0.0
  %870 = vmatprep.subr.mxu0 0.0
  %871 = vmatpush1.msra.mxu0 0.0
  %872 = vmatprep.subr.mxu0 0.0
  %873 = vmatpush1.msra.mxu0 %v49
  %874 = vmatprep.subr.mxu0 0.0
  %875 = vmatpush1.msra.mxu0 %v48
  %876 = vmatprep.subr.mxu0 0.0
  %877 = vmatpush1.msra.mxu0 %v47
  %878 = vmatprep.subr.mxu0 0.0
  %879 = vmatpush1.msra.mxu0 %v46
  %880 = vmatprep.subr.mxu0 0.0
  %881 = vmatpush2.msra.mxu0 0.0
  %882 = vmatprep.subr.mxu0 0.0
  %883 = vmatpush2.msra.mxu0 0.0
  %884 = vmatprep.subr.mxu0 0.0
  %885 = vmatpush2.msra.mxu0 0.0
  %886 = vmatprep.subr.mxu0 0.0
  %887 = vmatpush2.msra.mxu0 0.0
  %888 = vmatprep.subr.mxu0 0.0
  %889 = vmatpush2.msra.mxu0 0.0
  %890 = vmatprep.subr.mxu0 0.0
  %891 = vmatpush2.msra.mxu0 0.0
  %892 = vmatprep.subr.mxu0 0.0
  %893 = vmatpush2.msra.mxu0 0.0
  %894 = vmatprep.subr.mxu0 0.0
  %895 = vmatpush2.msra.mxu0 0.0
  %896 = vmatprep.subr.mxu0 0.0
  %897 = vmatpush2.msra.mxu0 0.0
  %898 = vmatprep.subr.mxu0 0.0
  %899 = vmatpush2.msra.mxu0 0.0
  %900 = vmatprep.subr.mxu0 0.0
  %901 = vmatpush2.msra.mxu0 0.0
  %902 = vmatprep.subr.mxu0 0.0
  %903 = vmatpush2.msra.mxu0 0.0
  %904 = vmatprep.subr.mxu0 0.0
  %905 = vmatpush2.msra.mxu0 0.0
  %906 = vmatprep.subr.mxu0 0.0
  %907 = vmatpush2.msra.mxu0 0.0
  %908 = vmatprep.subr.mxu0 0.0
  %909 = vmatpush2.msra.mxu0 0.0
  %910 = vmatprep.subr.mxu0 0.0
  %911 = vmatpush2.msra.mxu0 0.0
  %912 = vmatprep.mubr.f32.mxu0 0.0
  %913 = vmatmul.mubr.f32.gmra.mxu0 %v846
  %v914 = vpop.f32.mrf.mxu0
  %v915 = vadd.f32 0.0, %v914
  %v916 = vpop.f32.mrf.mxu0
  %917 = vdwg.mxu0
  %919 = vrot.lane.b32.xlu0 %v842, 32
  %v920 = vpop.permute.xlu0 %919
  %v921 = vsel %vm204, %v920, 0
  %923 = vmatprep.subr.mxu0 0.0
  %924 = vmatpush1.msra.mxu0 0.0
  %925 = vmatprep.subr.mxu0 0.0
  %926 = vmatpush1.msra.mxu0 0.0
  %927 = vmatprep.subr.mxu0 0.0
  %928 = vmatpush1.msra.mxu0 0.0
  %929 = vmatprep.subr.mxu0 0.0
  %930 = vmatpush1.msra.mxu0 0.0
  %931 = vmatprep.subr.mxu0 0.0
  %932 = vmatpush1.msra.mxu0 0.0
  %933 = vmatprep.subr.mxu0 0.0
  %934 = vmatpush1.msra.mxu0 0.0
  %935 = vmatprep.subr.mxu0 0.0
  %936 = vmatpush1.msra.mxu0 0.0
  %937 = vmatprep.subr.mxu0 0.0
  %938 = vmatpush1.msra.mxu0 0.0
  %939 = vmatprep.subr.mxu0 0.0
  %940 = vmatpush1.msra.mxu0 0.0
  %941 = vmatprep.subr.mxu0 0.0
  %942 = vmatpush1.msra.mxu0 0.0
  %943 = vmatprep.subr.mxu0 0.0
  %944 = vmatpush1.msra.mxu0 0.0
  %945 = vmatprep.subr.mxu0 0.0
  %946 = vmatpush1.msra.mxu0 0.0
  %947 = vmatprep.subr.mxu0 0.0
  %948 = vmatpush1.msra.mxu0 %v45
  %949 = vmatprep.subr.mxu0 0.0
  %950 = vmatpush1.msra.mxu0 %v44
  %951 = vmatprep.subr.mxu0 0.0
  %952 = vmatpush1.msra.mxu0 %v43
  %953 = vmatprep.subr.mxu0 0.0
  %954 = vmatpush1.msra.mxu0 %v42
  %955 = vmatprep.subr.mxu0 0.0
  %956 = vmatpush2.msra.mxu0 0.0
  %957 = vmatprep.subr.mxu0 0.0
  %958 = vmatpush2.msra.mxu0 0.0
  %959 = vmatprep.subr.mxu0 0.0
  %960 = vmatpush2.msra.mxu0 0.0
  %961 = vmatprep.subr.mxu0 0.0
  %962 = vmatpush2.msra.mxu0 0.0
  %963 = vmatprep.subr.mxu0 0.0
  %964 = vmatpush2.msra.mxu0 0.0
  %965 = vmatprep.subr.mxu0 0.0
  %966 = vmatpush2.msra.mxu0 0.0
  %967 = vmatprep.subr.mxu0 0.0
  %968 = vmatpush2.msra.mxu0 0.0
  %969 = vmatprep.subr.mxu0 0.0
  %970 = vmatpush2.msra.mxu0 0.0
  %971 = vmatprep.subr.mxu0 0.0
  %972 = vmatpush2.msra.mxu0 0.0
  %973 = vmatprep.subr.mxu0 0.0
  %974 = vmatpush2.msra.mxu0 0.0
  %975 = vmatprep.subr.mxu0 0.0
  %976 = vmatpush2.msra.mxu0 0.0
  %977 = vmatprep.subr.mxu0 0.0
  %978 = vmatpush2.msra.mxu0 0.0
  %979 = vmatprep.subr.mxu0 0.0
  %980 = vmatpush2.msra.mxu0 0.0
  %981 = vmatprep.subr.mxu0 0.0
  %982 = vmatpush2.msra.mxu0 0.0
  %983 = vmatprep.subr.mxu0 0.0
  %984 = vmatpush2.msra.mxu0 0.0
  %985 = vmatprep.subr.mxu0 0.0
  %986 = vmatpush2.msra.mxu0 0.0
  %987 = vmatprep.mubr.f32.mxu0 0.0
  %988 = vmatmul.mubr.f32.gmra.mxu0 %v921
  %v989 = vpop.f32.mrf.mxu0
  %v990 = vadd.f32 %v915, %v989
  %v991 = vpop.f32.mrf.mxu0
  %992 = vdwg.mxu0
  %v993 = vadd.f32 %v990, %v202
  %v994 = vxor.u32 %v993, 2147483648
  %v995 = vmul.f32 %v994, 1.442695
  %v996 = vpow.pop %v995
  %v997 = vadd.f32 %v996, 1.0
  %v998 = vrcp.pop %v997
  %v999 = vmul.f32 1.0, %v998
  %v1000 = vmul.f32 %v999, 2.0
  %v1001 = vsub.f32 %v1000, 1.0
  %v1002 = vmul.f32 %v999, %v740
  %1004 = vrot.lane.b32.xlu0 %v1001, 64
  %v1005 = vpop.permute.xlu0 %1004
  %v1007 = vmul.f32 %v999, %v1005
  %1009 = vrot.lane.b32.xlu0 %v1007, 32
  %v1010 = vpop.permute.xlu0 %1009
  %v1012 = vadd.f32 %v1002, %v1010
  %v1013 = vtanh.pop %v1012
  %1015 = vrot.lane.b32.xlu0 %v1013, 64
  %v1016 = vpop.permute.xlu0 %1015
  %v1018 = vmul.f32 %v999, %v1016
  %1019 = vmatprep.subr.mxu0 0.0
  %1020 = vmatpush1.msra.mxu0 0.0
  %1021 = vmatprep.subr.mxu0 0.0
  %1022 = vmatpush1.msra.mxu0 0.0
  %1023 = vmatprep.subr.mxu0 0.0
  %1024 = vmatpush1.msra.mxu0 0.0
  %1025 = vmatprep.subr.mxu0 0.0
  %1026 = vmatpush1.msra.mxu0 0.0
  %1027 = vmatprep.subr.mxu0 0.0
  %1028 = vmatpush1.msra.mxu0 0.0
  %1029 = vmatprep.subr.mxu0 0.0
  %1030 = vmatpush1.msra.mxu0 0.0
  %1031 = vmatprep.subr.mxu0 0.0
  %1032 = vmatpush1.msra.mxu0 0.0
  %1033 = vmatprep.subr.mxu0 0.0
  %1034 = vmatpush1.msra.mxu0 0.0
  %1035 = vmatprep.subr.mxu0 0.0
  %1036 = vmatpush1.msra.mxu0 0.0
  %1037 = vmatprep.subr.mxu0 0.0
  %1038 = vmatpush1.msra.mxu0 0.0
  %1039 = vmatprep.subr.mxu0 0.0
  %1040 = vmatpush1.msra.mxu0 0.0
  %1041 = vmatprep.subr.mxu0 0.0
  %1042 = vmatpush1.msra.mxu0 0.0
  %1043 = vmatprep.subr.mxu0 0.0
  %1044 = vmatpush1.msra.mxu0 %v41
  %1045 = vmatprep.subr.mxu0 0.0
  %1046 = vmatpush1.msra.mxu0 %v40
  %1047 = vmatprep.subr.mxu0 0.0
  %1048 = vmatpush1.msra.mxu0 %v39
  %1049 = vmatprep.subr.mxu0 0.0
  %1050 = vmatpush1.msra.mxu0 %v38
  %1051 = vmatprep.subr.mxu0 0.0
  %1052 = vmatpush2.msra.mxu0 0.0
  %1053 = vmatprep.subr.mxu0 0.0
  %1054 = vmatpush2.msra.mxu0 0.0
  %1055 = vmatprep.subr.mxu0 0.0
  %1056 = vmatpush2.msra.mxu0 0.0
  %1057 = vmatprep.subr.mxu0 0.0
  %1058 = vmatpush2.msra.mxu0 0.0
  %1059 = vmatprep.subr.mxu0 0.0
  %1060 = vmatpush2.msra.mxu0 0.0
  %1061 = vmatprep.subr.mxu0 0.0
  %1062 = vmatpush2.msra.mxu0 0.0
  %1063 = vmatprep.subr.mxu0 0.0
  %1064 = vmatpush2.msra.mxu0 0.0
  %1065 = vmatprep.subr.mxu0 0.0
  %1066 = vmatpush2.msra.mxu0 0.0
  %1067 = vmatprep.subr.mxu0 0.0
  %1068 = vmatpush2.msra.mxu0 0.0
  %1069 = vmatprep.subr.mxu0 0.0
  %1070 = vmatpush2.msra.mxu0 0.0
  %1071 = vmatprep.subr.mxu0 0.0
  %1072 = vmatpush2.msra.mxu0 0.0
  %1073 = vmatprep.subr.mxu0 0.0
  %1074 = vmatpush2.msra.mxu0 0.0
  %1075 = vmatprep.subr.mxu0 0.0
  %1076 = vmatpush2.msra.mxu0 0.0
  %1077 = vmatprep.subr.mxu0 0.0
  %1078 = vmatpush2.msra.mxu0 0.0
  %1079 = vmatprep.subr.mxu0 0.0
  %1080 = vmatpush2.msra.mxu0 0.0
  %1081 = vmatprep.subr.mxu0 0.0
  %1082 = vmatpush2.msra.mxu0 0.0
  %1083 = vmatprep.mubr.f32.mxu0 0.0
  %1084 = vmatmul.mubr.f32.gmra.mxu0 %v921
  %v1085 = vpop.f32.mrf.mxu0
  %v1086 = vadd.f32 0.0, %v1085
  %v1087 = vpop.f32.mrf.mxu0
  %1088 = vdwg.mxu0
  %v1089 = vadd.f32 %v174, %v1086
  %v1090 = vxor.u32 %v1089, 2147483648
  %v1091 = vmul.f32 %v1090, 1.442695
  %v1092 = vpow.pop %v1091
  %v1093 = vadd.f32 %v1092, 1.0
  %v1094 = vrcp.pop %v1093
  %v1095 = vmul.f32 1.0, %v1094
  %v1096 = vmul.f32 %v1095, 2.0
  %v1097 = vsub.f32 %v1096, 1.0
  %v1098 = vmul.f32 %v1095, %v836
  %1100 = vrot.lane.b32.xlu0 %v1097, 64
  %v1101 = vpop.permute.xlu0 %1100
  %v1103 = vmul.f32 %v1095, %v1101
  %1105 = vrot.lane.b32.xlu0 %v1103, 32
  %v1106 = vpop.permute.xlu0 %1105
  %v1108 = vadd.f32 %v1098, %v1106
  %v1109 = vtanh.pop %v1108
  %1111 = vrot.lane.b32.xlu0 %v1109, 64
  %v1112 = vpop.permute.xlu0 %1111
  %v1114 = vmul.f32 %v1095, %v1112
  %1116 = vrot.lane.b32.xlu0 %v1018, 32
  %v1117 = vpop.permute.xlu0 %1116
  %v1118 = vsel %vm204, %v1117, 0
  %1120 = vmatprep.subr.mxu0 0.0
  %1121 = vmatpush1.msra.mxu0 0.0
  %1122 = vmatprep.subr.mxu0 0.0
  %1123 = vmatpush1.msra.mxu0 0.0
  %1124 = vmatprep.subr.mxu0 0.0
  %1125 = vmatpush1.msra.mxu0 0.0
  %1126 = vmatprep.subr.mxu0 0.0
  %1127 = vmatpush1.msra.mxu0 0.0
  %1128 = vmatprep.subr.mxu0 0.0
  %1129 = vmatpush1.msra.mxu0 0.0
  %1130 = vmatprep.subr.mxu0 0.0
  %1131 = vmatpush1.msra.mxu0 0.0
  %1132 = vmatprep.subr.mxu0 0.0
  %1133 = vmatpush1.msra.mxu0 0.0
  %1134 = vmatprep.subr.mxu0 0.0
  %1135 = vmatpush1.msra.mxu0 0.0
  %1136 = vmatprep.subr.mxu0 0.0
  %1137 = vmatpush1.msra.mxu0 0.0
  %1138 = vmatprep.subr.mxu0 0.0
  %1139 = vmatpush1.msra.mxu0 0.0
  %1140 = vmatprep.subr.mxu0 0.0
  %1141 = vmatpush1.msra.mxu0 0.0
  %1142 = vmatprep.subr.mxu0 0.0
  %1143 = vmatpush1.msra.mxu0 0.0
  %1144 = vmatprep.subr.mxu0 0.0
  %1145 = vmatpush1.msra.mxu0 %v49
  %1146 = vmatprep.subr.mxu0 0.0
  %1147 = vmatpush1.msra.mxu0 %v48
  %1148 = vmatprep.subr.mxu0 0.0
  %1149 = vmatpush1.msra.mxu0 %v47
  %1150 = vmatprep.subr.mxu0 0.0
  %1151 = vmatpush1.msra.mxu0 %v46
  %1152 = vmatprep.subr.mxu0 0.0
  %1153 = vmatpush2.msra.mxu0 0.0
  %1154 = vmatprep.subr.mxu0 0.0
  %1155 = vmatpush2.msra.mxu0 0.0
  %1156 = vmatprep.subr.mxu0 0.0
  %1157 = vmatpush2.msra.mxu0 0.0
  %1158 = vmatprep.subr.mxu0 0.0
  %1159 = vmatpush2.msra.mxu0 0.0
  %1160 = vmatprep.subr.mxu0 0.0
  %1161 = vmatpush2.msra.mxu0 0.0
  %1162 = vmatprep.subr.mxu0 0.0
  %1163 = vmatpush2.msra.mxu0 0.0
  %1164 = vmatprep.subr.mxu0 0.0
  %1165 = vmatpush2.msra.mxu0 0.0
  %1166 = vmatprep.subr.mxu0 0.0
  %1167 = vmatpush2.msra.mxu0 0.0
  %1168 = vmatprep.subr.mxu0 0.0
  %1169 = vmatpush2.msra.mxu0 0.0
  %1170 = vmatprep.subr.mxu0 0.0
  %1171 = vmatpush2.msra.mxu0 0.0
  %1172 = vmatprep.subr.mxu0 0.0
  %1173 = vmatpush2.msra.mxu0 0.0
  %1174 = vmatprep.subr.mxu0 0.0
  %1175 = vmatpush2.msra.mxu0 0.0
  %1176 = vmatprep.subr.mxu0 0.0
  %1177 = vmatpush2.msra.mxu0 0.0
  %1178 = vmatprep.subr.mxu0 0.0
  %1179 = vmatpush2.msra.mxu0 0.0
  %1180 = vmatprep.subr.mxu0 0.0
  %1181 = vmatpush2.msra.mxu0 0.0
  %1182 = vmatprep.subr.mxu0 0.0
  %1183 = vmatpush2.msra.mxu0 0.0
  %1184 = vmatprep.mubr.f32.mxu0 0.0
  %1185 = vmatmul.mubr.f32.gmra.mxu0 %v1118
  %v1186 = vpop.f32.mrf.mxu0
  %v1187 = vadd.f32 0.0, %v1186
  %v1188 = vpop.f32.mrf.mxu0
  %1189 = vdwg.mxu0
  %1191 = vrot.lane.b32.xlu0 %v1114, 32
  %v1192 = vpop.permute.xlu0 %1191
  %v1193 = vsel %vm204, %v1192, 0
  %1195 = vmatprep.subr.mxu0 0.0
  %1196 = vmatpush1.msra.mxu0 0.0
  %1197 = vmatprep.subr.mxu0 0.0
  %1198 = vmatpush1.msra.mxu0 0.0
  %1199 = vmatprep.subr.mxu0 0.0
  %1200 = vmatpush1.msra.mxu0 0.0
  %1201 = vmatprep.subr.mxu0 0.0
  %1202 = vmatpush1.msra.mxu0 0.0
  %1203 = vmatprep.subr.mxu0 0.0
  %1204 = vmatpush1.msra.mxu0 0.0
  %1205 = vmatprep.subr.mxu0 0.0
  %1206 = vmatpush1.msra.mxu0 0.0
  %1207 = vmatprep.subr.mxu0 0.0
  %1208 = vmatpush1.msra.mxu0 0.0
  %1209 = vmatprep.subr.mxu0 0.0
  %1210 = vmatpush1.msra.mxu0 0.0
  %1211 = vmatprep.subr.mxu0 0.0
  %1212 = vmatpush1.msra.mxu0 0.0
  %1213 = vmatprep.subr.mxu0 0.0
  %1214 = vmatpush1.msra.mxu0 0.0
  %1215 = vmatprep.subr.mxu0 0.0
  %1216 = vmatpush1.msra.mxu0 0.0
  %1217 = vmatprep.subr.mxu0 0.0
  %1218 = vmatpush1.msra.mxu0 0.0
  %1219 = vmatprep.subr.mxu0 0.0
  %1220 = vmatpush1.msra.mxu0 %v45
  %1221 = vmatprep.subr.mxu0 0.0
  %1222 = vmatpush1.msra.mxu0 %v44
  %1223 = vmatprep.subr.mxu0 0.0
  %1224 = vmatpush1.msra.mxu0 %v43
  %1225 = vmatprep.subr.mxu0 0.0
  %1226 = vmatpush1.msra.mxu0 %v42
  %1227 = vmatprep.subr.mxu0 0.0
  %1228 = vmatpush2.msra.mxu0 0.0
  %1229 = vmatprep.subr.mxu0 0.0
  %1230 = vmatpush2.msra.mxu0 0.0
  %1231 = vmatprep.subr.mxu0 0.0
  %1232 = vmatpush2.msra.mxu0 0.0
  %1233 = vmatprep.subr.mxu0 0.0
  %1234 = vmatpush2.msra.mxu0 0.0
  %1235 = vmatprep.subr.mxu0 0.0
  %1236 = vmatpush2.msra.mxu0 0.0
  %1237 = vmatprep.subr.mxu0 0.0
  %1238 = vmatpush2.msra.mxu0 0.0
  %1239 = vmatprep.subr.mxu0 0.0
  %1240 = vmatpush2.msra.mxu0 0.0
  %1241 = vmatprep.subr.mxu0 0.0
  %1242 = vmatpush2.msra.mxu0 0.0
  %1243 = vmatprep.subr.mxu0 0.0
  %1244 = vmatpush2.msra.mxu0 0.0
  %1245 = vmatprep.subr.mxu0 0.0
  %1246 = vmatpush2.msra.mxu0 0.0
  %1247 = vmatprep.subr.mxu0 0.0
  %1248 = vmatpush2.msra.mxu0 0.0
  %1249 = vmatprep.subr.mxu0 0.0
  %1250 = vmatpush2.msra.mxu0 0.0
  %1251 = vmatprep.subr.mxu0 0.0
  %1252 = vmatpush2.msra.mxu0 0.0
  %1253 = vmatprep.subr.mxu0 0.0
  %1254 = vmatpush2.msra.mxu0 0.0
  %1255 = vmatprep.subr.mxu0 0.0
  %1256 = vmatpush2.msra.mxu0 0.0
  %1257 = vmatprep.subr.mxu0 0.0
  %1258 = vmatpush2.msra.mxu0 0.0
  %1259 = vmatprep.mubr.f32.mxu0 0.0
  %1260 = vmatmul.mubr.f32.gmra.mxu0 %v1193
  %v1261 = vpop.f32.mrf.mxu0
  %v1262 = vadd.f32 %v1187, %v1261
  %v1263 = vpop.f32.mrf.mxu0
  %1264 = vdwg.mxu0
  %v1265 = vadd.f32 %v1262, %v202
  %v1266 = vxor.u32 %v1265, 2147483648
  %v1267 = vmul.f32 %v1266, 1.442695
  %v1268 = vpow.pop %v1267
  %v1269 = vadd.f32 %v1268, 1.0
  %v1270 = vrcp.pop %v1269
  %v1271 = vmul.f32 1.0, %v1270
  %v1272 = vmul.f32 %v1271, 2.0
  %v1273 = vsub.f32 %v1272, 1.0
  %v1274 = vmul.f32 %v1271, %v1012
  %1276 = vrot.lane.b32.xlu0 %v1273, 64
  %v1277 = vpop.permute.xlu0 %1276
  %v1279 = vmul.f32 %v1271, %v1277
  %1281 = vrot.lane.b32.xlu0 %v1279, 32
  %v1282 = vpop.permute.xlu0 %1281
  %v1284 = vadd.f32 %v1274, %v1282
  %v1285 = vtanh.pop %v1284
  %1287 = vrot.lane.b32.xlu0 %v1285, 64
  %v1288 = vpop.permute.xlu0 %1287
  %v1290 = vmul.f32 %v1271, %v1288
  %1291 = vmatprep.subr.mxu0 0.0
  %1292 = vmatpush1.msra.mxu0 0.0
  %1293 = vmatprep.subr.mxu0 0.0
  %1294 = vmatpush1.msra.mxu0 0.0
  %1295 = vmatprep.subr.mxu0 0.0
  %1296 = vmatpush1.msra.mxu0 0.0
  %1297 = vmatprep.subr.mxu0 0.0
  %1298 = vmatpush1.msra.mxu0 0.0
  %1299 = vmatprep.subr.mxu0 0.0
  %1300 = vmatpush1.msra.mxu0 0.0
  %1301 = vmatprep.subr.mxu0 0.0
  %1302 = vmatpush1.msra.mxu0 0.0
  %1303 = vmatprep.subr.mxu0 0.0
  %1304 = vmatpush1.msra.mxu0 0.0
  %1305 = vmatprep.subr.mxu0 0.0
  %1306 = vmatpush1.msra.mxu0 0.0
  %1307 = vmatprep.subr.mxu0 0.0
  %1308 = vmatpush1.msra.mxu0 0.0
  %1309 = vmatprep.subr.mxu0 0.0
  %1310 = vmatpush1.msra.mxu0 0.0
  %1311 = vmatprep.subr.mxu0 0.0
  %1312 = vmatpush1.msra.mxu0 0.0
  %1313 = vmatprep.subr.mxu0 0.0
  %1314 = vmatpush1.msra.mxu0 0.0
  %1315 = vmatprep.subr.mxu0 0.0
  %1316 = vmatpush1.msra.mxu0 %v41
  %1317 = vmatprep.subr.mxu0 0.0
  %1318 = vmatpush1.msra.mxu0 %v40
  %1319 = vmatprep.subr.mxu0 0.0
  %1320 = vmatpush1.msra.mxu0 %v39
  %1321 = vmatprep.subr.mxu0 0.0
  %1322 = vmatpush1.msra.mxu0 %v38
  %1323 = vmatprep.subr.mxu0 0.0
  %1324 = vmatpush2.msra.mxu0 0.0
  %1325 = vmatprep.subr.mxu0 0.0
  %1326 = vmatpush2.msra.mxu0 0.0
  %1327 = vmatprep.subr.mxu0 0.0
  %1328 = vmatpush2.msra.mxu0 0.0
  %1329 = vmatprep.subr.mxu0 0.0
  %1330 = vmatpush2.msra.mxu0 0.0
  %1331 = vmatprep.subr.mxu0 0.0
  %1332 = vmatpush2.msra.mxu0 0.0
  %1333 = vmatprep.subr.mxu0 0.0
  %1334 = vmatpush2.msra.mxu0 0.0
  %1335 = vmatprep.subr.mxu0 0.0
  %1336 = vmatpush2.msra.mxu0 0.0
  %1337 = vmatprep.subr.mxu0 0.0
  %1338 = vmatpush2.msra.mxu0 0.0
  %1339 = vmatprep.subr.mxu0 0.0
  %1340 = vmatpush2.msra.mxu0 0.0
  %1341 = vmatprep.subr.mxu0 0.0
  %1342 = vmatpush2.msra.mxu0 0.0
  %1343 = vmatprep.subr.mxu0 0.0
  %1344 = vmatpush2.msra.mxu0 0.0
  %1345 = vmatprep.subr.mxu0 0.0
  %1346 = vmatpush2.msra.mxu0 0.0
  %1347 = vmatprep.subr.mxu0 0.0
  %1348 = vmatpush2.msra.mxu0 0.0
  %1349 = vmatprep.subr.mxu0 0.0
  %1350 = vmatpush2.msra.mxu0 0.0
  %1351 = vmatprep.subr.mxu0 0.0
  %1352 = vmatpush2.msra.mxu0 0.0
  %1353 = vmatprep.subr.mxu0 0.0
  %1354 = vmatpush2.msra.mxu0 0.0
  %1355 = vmatprep.mubr.f32.mxu0 0.0
  %1356 = vmatmul.mubr.f32.gmra.mxu0 %v1193
  %v1357 = vpop.f32.mrf.mxu0
  %v1358 = vadd.f32 0.0, %v1357
  %v1359 = vpop.f32.mrf.mxu0
  %1360 = vdwg.mxu0
  %v1361 = vadd.f32 %v179, %v1358
  %v1362 = vxor.u32 %v1361, 2147483648
  %v1363 = vmul.f32 %v1362, 1.442695
  %v1364 = vpow.pop %v1363
  %v1365 = vadd.f32 %v1364, 1.0
  %v1366 = vrcp.pop %v1365
  %v1367 = vmul.f32 1.0, %v1366
  %v1368 = vmul.f32 %v1367, 2.0
  %v1369 = vsub.f32 %v1368, 1.0
  %v1370 = vmul.f32 %v1367, %v1108
  %1372 = vrot.lane.b32.xlu0 %v1369, 64
  %v1373 = vpop.permute.xlu0 %1372
  %v1375 = vmul.f32 %v1367, %v1373
  %1377 = vrot.lane.b32.xlu0 %v1375, 32
  %v1378 = vpop.permute.xlu0 %1377
  %v1380 = vadd.f32 %v1370, %v1378
  %v1381 = vtanh.pop %v1380
  %1383 = vrot.lane.b32.xlu0 %v1381, 64
  %v1384 = vpop.permute.xlu0 %1383
  %v1386 = vmul.f32 %v1367, %v1384
  %1388 = vrot.lane.b32.xlu0 %v1290, 32
  %v1389 = vpop.permute.xlu0 %1388
  %v1390 = vsel %vm204, %v1389, 0
  %1392 = vmatprep.subr.mxu0 0.0
  %1393 = vmatpush1.msra.mxu0 0.0
  %1394 = vmatprep.subr.mxu0 0.0
  %1395 = vmatpush1.msra.mxu0 0.0
  %1396 = vmatprep.subr.mxu0 0.0
  %1397 = vmatpush1.msra.mxu0 0.0
  %1398 = vmatprep.subr.mxu0 0.0
  %1399 = vmatpush1.msra.mxu0 0.0
  %1400 = vmatprep.subr.mxu0 0.0
  %1401 = vmatpush1.msra.mxu0 0.0
  %1402 = vmatprep.subr.mxu0 0.0
  %1403 = vmatpush1.msra.mxu0 0.0
  %1404 = vmatprep.subr.mxu0 0.0
  %1405 = vmatpush1.msra.mxu0 0.0
  %1406 = vmatprep.subr.mxu0 0.0
  %1407 = vmatpush1.msra.mxu0 0.0
  %1408 = vmatprep.subr.mxu0 0.0
  %1409 = vmatpush1.msra.mxu0 0.0
  %1410 = vmatprep.subr.mxu0 0.0
  %1411 = vmatpush1.msra.mxu0 0.0
  %1412 = vmatprep.subr.mxu0 0.0
  %1413 = vmatpush1.msra.mxu0 0.0
  %1414 = vmatprep.subr.mxu0 0.0
  %1415 = vmatpush1.msra.mxu0 0.0
  %1416 = vmatprep.subr.mxu0 0.0
  %1417 = vmatpush1.msra.mxu0 %v49
  %1418 = vmatprep.subr.mxu0 0.0
  %1419 = vmatpush1.msra.mxu0 %v48
  %1420 = vmatprep.subr.mxu0 0.0
  %1421 = vmatpush1.msra.mxu0 %v47
  %1422 = vmatprep.subr.mxu0 0.0
  %1423 = vmatpush1.msra.mxu0 %v46
  %1424 = vmatprep.subr.mxu0 0.0
  %1425 = vmatpush2.msra.mxu0 0.0
  %1426 = vmatprep.subr.mxu0 0.0
  %1427 = vmatpush2.msra.mxu0 0.0
  %1428 = vmatprep.subr.mxu0 0.0
  %1429 = vmatpush2.msra.mxu0 0.0
  %1430 = vmatprep.subr.mxu0 0.0
  %1431 = vmatpush2.msra.mxu0 0.0
  %1432 = vmatprep.subr.mxu0 0.0
  %1433 = vmatpush2.msra.mxu0 0.0
  %1434 = vmatprep.subr.mxu0 0.0
  %1435 = vmatpush2.msra.mxu0 0.0
  %1436 = vmatprep.subr.mxu0 0.0
  %1437 = vmatpush2.msra.mxu0 0.0
  %1438 = vmatprep.subr.mxu0 0.0
  %1439 = vmatpush2.msra.mxu0 0.0
  %1440 = vmatprep.subr.mxu0 0.0
  %1441 = vmatpush2.msra.mxu0 0.0
  %1442 = vmatprep.subr.mxu0 0.0
  %1443 = vmatpush2.msra.mxu0 0.0
  %1444 = vmatprep.subr.mxu0 0.0
  %1445 = vmatpush2.msra.mxu0 0.0
  %1446 = vmatprep.subr.mxu0 0.0
  %1447 = vmatpush2.msra.mxu0 0.0
  %1448 = vmatprep.subr.mxu0 0.0
  %1449 = vmatpush2.msra.mxu0 0.0
  %1450 = vmatprep.subr.mxu0 0.0
  %1451 = vmatpush2.msra.mxu0 0.0
  %1452 = vmatprep.subr.mxu0 0.0
  %1453 = vmatpush2.msra.mxu0 0.0
  %1454 = vmatprep.subr.mxu0 0.0
  %1455 = vmatpush2.msra.mxu0 0.0
  %1456 = vmatprep.mubr.f32.mxu0 0.0
  %1457 = vmatmul.mubr.f32.gmra.mxu0 %v1390
  %v1458 = vpop.f32.mrf.mxu0
  %v1459 = vadd.f32 0.0, %v1458
  %v1460 = vpop.f32.mrf.mxu0
  %1461 = vdwg.mxu0
  %1463 = vrot.lane.b32.xlu0 %v1386, 32
  %v1464 = vpop.permute.xlu0 %1463
  %v1465 = vsel %vm204, %v1464, 0
  %1467 = vmatprep.subr.mxu0 0.0
  %1468 = vmatpush1.msra.mxu0 0.0
  %1469 = vmatprep.subr.mxu0 0.0
  %1470 = vmatpush1.msra.mxu0 0.0
  %1471 = vmatprep.subr.mxu0 0.0
  %1472 = vmatpush1.msra.mxu0 0.0
  %1473 = vmatprep.subr.mxu0 0.0
  %1474 = vmatpush1.msra.mxu0 0.0
  %1475 = vmatprep.subr.mxu0 0.0
  %1476 = vmatpush1.msra.mxu0 0.0
  %1477 = vmatprep.subr.mxu0 0.0
  %1478 = vmatpush1.msra.mxu0 0.0
  %1479 = vmatprep.subr.mxu0 0.0
  %1480 = vmatpush1.msra.mxu0 0.0
  %1481 = vmatprep.subr.mxu0 0.0
  %1482 = vmatpush1.msra.mxu0 0.0
  %1483 = vmatprep.subr.mxu0 0.0
  %1484 = vmatpush1.msra.mxu0 0.0
  %1485 = vmatprep.subr.mxu0 0.0
  %1486 = vmatpush1.msra.mxu0 0.0
  %1487 = vmatprep.subr.mxu0 0.0
  %1488 = vmatpush1.msra.mxu0 0.0
  %1489 = vmatprep.subr.mxu0 0.0
  %1490 = vmatpush1.msra.mxu0 0.0
  %1491 = vmatprep.subr.mxu0 0.0
  %1492 = vmatpush1.msra.mxu0 %v45
  %1493 = vmatprep.subr.mxu0 0.0
  %1494 = vmatpush1.msra.mxu0 %v44
  %1495 = vmatprep.subr.mxu0 0.0
  %1496 = vmatpush1.msra.mxu0 %v43
  %1497 = vmatprep.subr.mxu0 0.0
  %1498 = vmatpush1.msra.mxu0 %v42
  %1499 = vmatprep.subr.mxu0 0.0
  %1500 = vmatpush2.msra.mxu0 0.0
  %1501 = vmatprep.subr.mxu0 0.0
  %1502 = vmatpush2.msra.mxu0 0.0
  %1503 = vmatprep.subr.mxu0 0.0
  %1504 = vmatpush2.msra.mxu0 0.0
  %1505 = vmatprep.subr.mxu0 0.0
  %1506 = vmatpush2.msra.mxu0 0.0
  %1507 = vmatprep.subr.mxu0 0.0
  %1508 = vmatpush2.msra.mxu0 0.0
  %1509 = vmatprep.subr.mxu0 0.0
  %1510 = vmatpush2.msra.mxu0 0.0
  %1511 = vmatprep.subr.mxu0 0.0
  %1512 = vmatpush2.msra.mxu0 0.0
  %1513 = vmatprep.subr.mxu0 0.0
  %1514 = vmatpush2.msra.mxu0 0.0
  %1515 = vmatprep.subr.mxu0 0.0
  %1516 = vmatpush2.msra.mxu0 0.0
  %1517 = vmatprep.subr.mxu0 0.0
  %1518 = vmatpush2.msra.mxu0 0.0
  %1519 = vmatprep.subr.mxu0 0.0
  %1520 = vmatpush2.msra.mxu0 0.0
  %1521 = vmatprep.subr.mxu0 0.0
  %1522 = vmatpush2.msra.mxu0 0.0
  %1523 = vmatprep.subr.mxu0 0.0
  %1524 = vmatpush2.msra.mxu0 0.0
  %1525 = vmatprep.subr.mxu0 0.0
  %1526 = vmatpush2.msra.mxu0 0.0
  %1527 = vmatprep.subr.mxu0 0.0
  %1528 = vmatpush2.msra.mxu0 0.0
  %1529 = vmatprep.subr.mxu0 0.0
  %1530 = vmatpush2.msra.mxu0 0.0
  %1531 = vmatprep.mubr.f32.mxu0 0.0
  %1532 = vmatmul.mubr.f32.gmra.mxu0 %v1465
  %v1533 = vpop.f32.mrf.mxu0
  %v1534 = vadd.f32 %v1459, %v1533
  %v1535 = vpop.f32.mrf.mxu0
  %1536 = vdwg.mxu0
  %v1537 = vadd.f32 %v1534, %v202
  %v1538 = vxor.u32 %v1537, 2147483648
  %v1539 = vmul.f32 %v1538, 1.442695
  %v1540 = vpow.pop %v1539
  %v1541 = vadd.f32 %v1540, 1.0
  %v1542 = vrcp.pop %v1541
  %v1543 = vmul.f32 1.0, %v1542
  %v1544 = vmul.f32 %v1543, 2.0
  %v1545 = vsub.f32 %v1544, 1.0
  %v1546 = vmul.f32 %v1543, %v1284
  %1548 = vrot.lane.b32.xlu0 %v1545, 64
  %v1549 = vpop.permute.xlu0 %1548
  %v1551 = vmul.f32 %v1543, %v1549
  %1553 = vrot.lane.b32.xlu0 %v1551, 32
  %v1554 = vpop.permute.xlu0 %1553
  %v1556 = vadd.f32 %v1546, %v1554
  %v1557 = vtanh.pop %v1556
  %1559 = vrot.lane.b32.xlu0 %v1557, 64
  %v1560 = vpop.permute.xlu0 %1559
  %v1562 = vmul.f32 %v1543, %v1560
  %1563 = vmatprep.subr.mxu0 0.0
  %1564 = vmatpush1.msra.mxu0 0.0
  %1565 = vmatprep.subr.mxu0 0.0
  %1566 = vmatpush1.msra.mxu0 0.0
  %1567 = vmatprep.subr.mxu0 0.0
  %1568 = vmatpush1.msra.mxu0 0.0
  %1569 = vmatprep.subr.mxu0 0.0
  %1570 = vmatpush1.msra.mxu0 0.0
  %1571 = vmatprep.subr.mxu0 0.0
  %1572 = vmatpush1.msra.mxu0 0.0
  %1573 = vmatprep.subr.mxu0 0.0
  %1574 = vmatpush1.msra.mxu0 0.0
  %1575 = vmatprep.subr.mxu0 0.0
  %1576 = vmatpush1.msra.mxu0 0.0
  %1577 = vmatprep.subr.mxu0 0.0
  %1578 = vmatpush1.msra.mxu0 0.0
  %1579 = vmatprep.subr.mxu0 0.0
  %1580 = vmatpush1.msra.mxu0 0.0
  %1581 = vmatprep.subr.mxu0 0.0
  %1582 = vmatpush1.msra.mxu0 0.0
  %1583 = vmatprep.subr.mxu0 0.0
  %1584 = vmatpush1.msra.mxu0 0.0
  %1585 = vmatprep.subr.mxu0 0.0
  %1586 = vmatpush1.msra.mxu0 0.0
  %1587 = vmatprep.subr.mxu0 0.0
  %1588 = vmatpush1.msra.mxu0 %v41
  %1589 = vmatprep.subr.mxu0 0.0
  %1590 = vmatpush1.msra.mxu0 %v40
  %1591 = vmatprep.subr.mxu0 0.0
  %1592 = vmatpush1.msra.mxu0 %v39
  %1593 = vmatprep.subr.mxu0 0.0
  %1594 = vmatpush1.msra.mxu0 %v38
  %1595 = vmatprep.subr.mxu0 0.0
  %1596 = vmatpush2.msra.mxu0 0.0
  %1597 = vmatprep.subr.mxu0 0.0
  %1598 = vmatpush2.msra.mxu0 0.0
  %1599 = vmatprep.subr.mxu0 0.0
  %1600 = vmatpush2.msra.mxu0 0.0
  %1601 = vmatprep.subr.mxu0 0.0
  %1602 = vmatpush2.msra.mxu0 0.0
  %1603 = vmatprep.subr.mxu0 0.0
  %1604 = vmatpush2.msra.mxu0 0.0
  %1605 = vmatprep.subr.mxu0 0.0
  %1606 = vmatpush2.msra.mxu0 0.0
  %1607 = vmatprep.subr.mxu0 0.0
  %1608 = vmatpush2.msra.mxu0 0.0
  %1609 = vmatprep.subr.mxu0 0.0
  %1610 = vmatpush2.msra.mxu0 0.0
  %1611 = vmatprep.subr.mxu0 0.0
  %1612 = vmatpush2.msra.mxu0 0.0
  %1613 = vmatprep.subr.mxu0 0.0
  %1614 = vmatpush2.msra.mxu0 0.0
  %1615 = vmatprep.subr.mxu0 0.0
  %1616 = vmatpush2.msra.mxu0 0.0
  %1617 = vmatprep.subr.mxu0 0.0
  %1618 = vmatpush2.msra.mxu0 0.0
  %1619 = vmatprep.subr.mxu0 0.0
  %1620 = vmatpush2.msra.mxu0 0.0
  %1621 = vmatprep.subr.mxu0 0.0
  %1622 = vmatpush2.msra.mxu0 0.0
  %1623 = vmatprep.subr.mxu0 0.0
  %1624 = vmatpush2.msra.mxu0 0.0
  %1625 = vmatprep.subr.mxu0 0.0
  %1626 = vmatpush2.msra.mxu0 0.0
  %1627 = vmatprep.mubr.f32.mxu0 0.0
  %1628 = vmatmul.mubr.f32.gmra.mxu0 %v1465
  %v1629 = vpop.f32.mrf.mxu0
  %v1630 = vadd.f32 0.0, %v1629
  %v1631 = vpop.f32.mrf.mxu0
  %1632 = vdwg.mxu0
  %v1633 = vadd.f32 %v184, %v1630
  %v1634 = vxor.u32 %v1633, 2147483648
  %v1635 = vmul.f32 %v1634, 1.442695
  %v1636 = vpow.pop %v1635
  %v1637 = vadd.f32 %v1636, 1.0
  %v1638 = vrcp.pop %v1637
  %v1639 = vmul.f32 1.0, %v1638
  %v1640 = vmul.f32 %v1639, 2.0
  %v1641 = vsub.f32 %v1640, 1.0
  %v1642 = vmul.f32 %v1639, %v1380
  %1644 = vrot.lane.b32.xlu0 %v1641, 64
  %v1645 = vpop.permute.xlu0 %1644
  %v1647 = vmul.f32 %v1639, %v1645
  %1649 = vrot.lane.b32.xlu0 %v1647, 32
  %v1650 = vpop.permute.xlu0 %1649
  %v1652 = vadd.f32 %v1642, %v1650
  %v1653 = vtanh.pop %v1652
  %1655 = vrot.lane.b32.xlu0 %v1653, 64
  %v1656 = vpop.permute.xlu0 %1655
  %v1658 = vmul.f32 %v1639, %v1656
  %1660 = vrot.lane.b32.xlu0 %v1562, 32
  %v1661 = vpop.permute.xlu0 %1660
  %v1662 = vsel %vm204, %v1661, 0
  %1664 = vmatprep.subr.mxu0 0.0
  %1665 = vmatpush1.msra.mxu0 0.0
  %1666 = vmatprep.subr.mxu0 0.0
  %1667 = vmatpush1.msra.mxu0 0.0
  %1668 = vmatprep.subr.mxu0 0.0
  %1669 = vmatpush1.msra.mxu0 0.0
  %1670 = vmatprep.subr.mxu0 0.0
  %1671 = vmatpush1.msra.mxu0 0.0
  %1672 = vmatprep.subr.mxu0 0.0
  %1673 = vmatpush1.msra.mxu0 0.0
  %1674 = vmatprep.subr.mxu0 0.0
  %1675 = vmatpush1.msra.mxu0 0.0
  %1676 = vmatprep.subr.mxu0 0.0
  %1677 = vmatpush1.msra.mxu0 0.0
  %1678 = vmatprep.subr.mxu0 0.0
  %1679 = vmatpush1.msra.mxu0 0.0
  %1680 = vmatprep.subr.mxu0 0.0
  %1681 = vmatpush1.msra.mxu0 0.0
  %1682 = vmatprep.subr.mxu0 0.0
  %1683 = vmatpush1.msra.mxu0 0.0
  %1684 = vmatprep.subr.mxu0 0.0
  %1685 = vmatpush1.msra.mxu0 0.0
  %1686 = vmatprep.subr.mxu0 0.0
  %1687 = vmatpush1.msra.mxu0 0.0
  %1688 = vmatprep.subr.mxu0 0.0
  %1689 = vmatpush1.msra.mxu0 %v49
  %1690 = vmatprep.subr.mxu0 0.0
  %1691 = vmatpush1.msra.mxu0 %v48
  %1692 = vmatprep.subr.mxu0 0.0
  %1693 = vmatpush1.msra.mxu0 %v47
  %1694 = vmatprep.subr.mxu0 0.0
  %1695 = vmatpush1.msra.mxu0 %v46
  %1696 = vmatprep.subr.mxu0 0.0
  %1697 = vmatpush2.msra.mxu0 0.0
  %1698 = vmatprep.subr.mxu0 0.0
  %1699 = vmatpush2.msra.mxu0 0.0
  %1700 = vmatprep.subr.mxu0 0.0
  %1701 = vmatpush2.msra.mxu0 0.0
  %1702 = vmatprep.subr.mxu0 0.0
  %1703 = vmatpush2.msra.mxu0 0.0
  %1704 = vmatprep.subr.mxu0 0.0
  %1705 = vmatpush2.msra.mxu0 0.0
  %1706 = vmatprep.subr.mxu0 0.0
  %1707 = vmatpush2.msra.mxu0 0.0
  %1708 = vmatprep.subr.mxu0 0.0
  %1709 = vmatpush2.msra.mxu0 0.0
  %1710 = vmatprep.subr.mxu0 0.0
  %1711 = vmatpush2.msra.mxu0 0.0
  %1712 = vmatprep.subr.mxu0 0.0
  %1713 = vmatpush2.msra.mxu0 0.0
  %1714 = vmatprep.subr.mxu0 0.0
  %1715 = vmatpush2.msra.mxu0 0.0
  %1716 = vmatprep.subr.mxu0 0.0
  %1717 = vmatpush2.msra.mxu0 0.0
  %1718 = vmatprep.subr.mxu0 0.0
  %1719 = vmatpush2.msra.mxu0 0.0
  %1720 = vmatprep.subr.mxu0 0.0
  %1721 = vmatpush2.msra.mxu0 0.0
  %1722 = vmatprep.subr.mxu0 0.0
  %1723 = vmatpush2.msra.mxu0 0.0
  %1724 = vmatprep.subr.mxu0 0.0
  %1725 = vmatpush2.msra.mxu0 0.0
  %1726 = vmatprep.subr.mxu0 0.0
  %1727 = vmatpush2.msra.mxu0 0.0
  %1728 = vmatprep.mubr.f32.mxu0 0.0
  %1729 = vmatmul.mubr.f32.gmra.mxu0 %v1662
  %v1730 = vpop.f32.mrf.mxu0
  %v1731 = vadd.f32 0.0, %v1730
  %v1732 = vpop.f32.mrf.mxu0
  %1733 = vdwg.mxu0
  %1735 = vrot.lane.b32.xlu0 %v1658, 32
  %v1736 = vpop.permute.xlu0 %1735
  %v1737 = vsel %vm204, %v1736, 0
  %1739 = vmatprep.subr.mxu0 0.0
  %1740 = vmatpush1.msra.mxu0 0.0
  %1741 = vmatprep.subr.mxu0 0.0
  %1742 = vmatpush1.msra.mxu0 0.0
  %1743 = vmatprep.subr.mxu0 0.0
  %1744 = vmatpush1.msra.mxu0 0.0
  %1745 = vmatprep.subr.mxu0 0.0
  %1746 = vmatpush1.msra.mxu0 0.0
  %1747 = vmatprep.subr.mxu0 0.0
  %1748 = vmatpush1.msra.mxu0 0.0
  %1749 = vmatprep.subr.mxu0 0.0
  %1750 = vmatpush1.msra.mxu0 0.0
  %1751 = vmatprep.subr.mxu0 0.0
  %1752 = vmatpush1.msra.mxu0 0.0
  %1753 = vmatprep.subr.mxu0 0.0
  %1754 = vmatpush1.msra.mxu0 0.0
  %1755 = vmatprep.subr.mxu0 0.0
  %1756 = vmatpush1.msra.mxu0 0.0
  %1757 = vmatprep.subr.mxu0 0.0
  %1758 = vmatpush1.msra.mxu0 0.0
  %1759 = vmatprep.subr.mxu0 0.0
  %1760 = vmatpush1.msra.mxu0 0.0
  %1761 = vmatprep.subr.mxu0 0.0
  %1762 = vmatpush1.msra.mxu0 0.0
  %1763 = vmatprep.subr.mxu0 0.0
  %1764 = vmatpush1.msra.mxu0 %v45
  %1765 = vmatprep.subr.mxu0 0.0
  %1766 = vmatpush1.msra.mxu0 %v44
  %1767 = vmatprep.subr.mxu0 0.0
  %1768 = vmatpush1.msra.mxu0 %v43
  %1769 = vmatprep.subr.mxu0 0.0
  %1770 = vmatpush1.msra.mxu0 %v42
  %1771 = vmatprep.subr.mxu0 0.0
  %1772 = vmatpush2.msra.mxu0 0.0
  %1773 = vmatprep.subr.mxu0 0.0
  %1774 = vmatpush2.msra.mxu0 0.0
  %1775 = vmatprep.subr.mxu0 0.0
  %1776 = vmatpush2.msra.mxu0 0.0
  %1777 = vmatprep.subr.mxu0 0.0
  %1778 = vmatpush2.msra.mxu0 0.0
  %1779 = vmatprep.subr.mxu0 0.0
  %1780 = vmatpush2.msra.mxu0 0.0
  %1781 = vmatprep.subr.mxu0 0.0
  %1782 = vmatpush2.msra.mxu0 0.0
  %1783 = vmatprep.subr.mxu0 0.0
  %1784 = vmatpush2.msra.mxu0 0.0
  %1785 = vmatprep.subr.mxu0 0.0
  %1786 = vmatpush2.msra.mxu0 0.0
  %1787 = vmatprep.subr.mxu0 0.0
  %1788 = vmatpush2.msra.mxu0 0.0
  %1789 = vmatprep.subr.mxu0 0.0
  %1790 = vmatpush2.msra.mxu0 0.0
  %1791 = vmatprep.subr.mxu0 0.0
  %1792 = vmatpush2.msra.mxu0 0.0
  %1793 = vmatprep.subr.mxu0 0.0
  %1794 = vmatpush2.msra.mxu0 0.0
  %1795 = vmatprep.subr.mxu0 0.0
  %1796 = vmatpush2.msra.mxu0 0.0
  %1797 = vmatprep.subr.mxu0 0.0
  %1798 = vmatpush2.msra.mxu0 0.0
  %1799 = vmatprep.subr.mxu0 0.0
  %1800 = vmatpush2.msra.mxu0 0.0
  %1801 = vmatprep.subr.mxu0 0.0
  %1802 = vmatpush2.msra.mxu0 0.0
  %1803 = vmatprep.mubr.f32.mxu0 0.0
  %1804 = vmatmul.mubr.f32.gmra.mxu0 %v1737
  %v1805 = vpop.f32.mrf.mxu0
  %v1806 = vadd.f32 %v1731, %v1805
  %v1807 = vpop.f32.mrf.mxu0
  %1808 = vdwg.mxu0
  %v1809 = vadd.f32 %v1806, %v202
  %v1810 = vxor.u32 %v1809, 2147483648
  %v1811 = vmul.f32 %v1810, 1.442695
  %v1812 = vpow.pop %v1811
  %v1813 = vadd.f32 %v1812, 1.0
  %v1814 = vrcp.pop %v1813
  %v1815 = vmul.f32 1.0, %v1814
  %v1816 = vmul.f32 %v1815, 2.0
  %v1817 = vsub.f32 %v1816, 1.0
  %v1818 = vmul.f32 %v1815, %v1556
  %1820 = vrot.lane.b32.xlu0 %v1817, 64
  %v1821 = vpop.permute.xlu0 %1820
  %v1823 = vmul.f32 %v1815, %v1821
  %1825 = vrot.lane.b32.xlu0 %v1823, 32
  %v1826 = vpop.permute.xlu0 %1825
  %v1828 = vadd.f32 %v1818, %v1826
  %v1829 = vtanh.pop %v1828
  %1831 = vrot.lane.b32.xlu0 %v1829, 64
  %v1832 = vpop.permute.xlu0 %1831
  %v1834 = vmul.f32 %v1815, %v1832
  %1835 = vmatprep.subr.mxu0 0.0
  %1836 = vmatpush1.msra.mxu0 0.0
  %1837 = vmatprep.subr.mxu0 0.0
  %1838 = vmatpush1.msra.mxu0 0.0
  %1839 = vmatprep.subr.mxu0 0.0
  %1840 = vmatpush1.msra.mxu0 0.0
  %1841 = vmatprep.subr.mxu0 0.0
  %1842 = vmatpush1.msra.mxu0 0.0
  %1843 = vmatprep.subr.mxu0 0.0
  %1844 = vmatpush1.msra.mxu0 0.0
  %1845 = vmatprep.subr.mxu0 0.0
  %1846 = vmatpush1.msra.mxu0 0.0
  %1847 = vmatprep.subr.mxu0 0.0
  %1848 = vmatpush1.msra.mxu0 0.0
  %1849 = vmatprep.subr.mxu0 0.0
  %1850 = vmatpush1.msra.mxu0 0.0
  %1851 = vmatprep.subr.mxu0 0.0
  %1852 = vmatpush1.msra.mxu0 0.0
  %1853 = vmatprep.subr.mxu0 0.0
  %1854 = vmatpush1.msra.mxu0 0.0
  %1855 = vmatprep.subr.mxu0 0.0
  %1856 = vmatpush1.msra.mxu0 0.0
  %1857 = vmatprep.subr.mxu0 0.0
  %1858 = vmatpush1.msra.mxu0 0.0
  %1859 = vmatprep.subr.mxu0 0.0
  %1860 = vmatpush1.msra.mxu0 %v41
  %1861 = vmatprep.subr.mxu0 0.0
  %1862 = vmatpush1.msra.mxu0 %v40
  %1863 = vmatprep.subr.mxu0 0.0
  %1864 = vmatpush1.msra.mxu0 %v39
  %1865 = vmatprep.subr.mxu0 0.0
  %1866 = vmatpush1.msra.mxu0 %v38
  %1867 = vmatprep.subr.mxu0 0.0
  %1868 = vmatpush2.msra.mxu0 0.0
  %1869 = vmatprep.subr.mxu0 0.0
  %1870 = vmatpush2.msra.mxu0 0.0
  %1871 = vmatprep.subr.mxu0 0.0
  %1872 = vmatpush2.msra.mxu0 0.0
  %1873 = vmatprep.subr.mxu0 0.0
  %1874 = vmatpush2.msra.mxu0 0.0
  %1875 = vmatprep.subr.mxu0 0.0
  %1876 = vmatpush2.msra.mxu0 0.0
  %1877 = vmatprep.subr.mxu0 0.0
  %1878 = vmatpush2.msra.mxu0 0.0
  %1879 = vmatprep.subr.mxu0 0.0
  %1880 = vmatpush2.msra.mxu0 0.0
  %1881 = vmatprep.subr.mxu0 0.0
  %1882 = vmatpush2.msra.mxu0 0.0
  %1883 = vmatprep.subr.mxu0 0.0
  %1884 = vmatpush2.msra.mxu0 0.0
  %1885 = vmatprep.subr.mxu0 0.0
  %1886 = vmatpush2.msra.mxu0 0.0
  %1887 = vmatprep.subr.mxu0 0.0
  %1888 = vmatpush2.msra.mxu0 0.0
  %1889 = vmatprep.subr.mxu0 0.0
  %1890 = vmatpush2.msra.mxu0 0.0
  %1891 = vmatprep.subr.mxu0 0.0
  %1892 = vmatpush2.msra.mxu0 0.0
  %1893 = vmatprep.subr.mxu0 0.0
  %1894 = vmatpush2.msra.mxu0 0.0
  %1895 = vmatprep.subr.mxu0 0.0
  %1896 = vmatpush2.msra.mxu0 0.0
  %1897 = vmatprep.subr.mxu0 0.0
  %1898 = vmatpush2.msra.mxu0 0.0
  %1899 = vmatprep.mubr.f32.mxu0 0.0
  %1900 = vmatmul.mubr.f32.gmra.mxu0 %v1737
  %v1901 = vpop.f32.mrf.mxu0
  %v1902 = vadd.f32 0.0, %v1901
  %v1903 = vpop.f32.mrf.mxu0
  %1904 = vdwg.mxu0
  %v1905 = vadd.f32 %v189, %v1902
  %v1906 = vxor.u32 %v1905, 2147483648
  %v1907 = vmul.f32 %v1906, 1.442695
  %v1908 = vpow.pop %v1907
  %v1909 = vadd.f32 %v1908, 1.0
  %v1910 = vrcp.pop %v1909
  %v1911 = vmul.f32 1.0, %v1910
  %v1912 = vmul.f32 %v1911, 2.0
  %v1913 = vsub.f32 %v1912, 1.0
  %v1914 = vmul.f32 %v1911, %v1652
  %1916 = vrot.lane.b32.xlu0 %v1913, 64
  %v1917 = vpop.permute.xlu0 %1916
  %v1919 = vmul.f32 %v1911, %v1917
  %1921 = vrot.lane.b32.xlu0 %v1919, 32
  %v1922 = vpop.permute.xlu0 %1921
  %v1924 = vadd.f32 %v1914, %v1922
  %v1925 = vtanh.pop %v1924
  %1927 = vrot.lane.b32.xlu0 %v1925, 64
  %v1928 = vpop.permute.xlu0 %1927
  %v1930 = vmul.f32 %v1911, %v1928
  %1932 = vrot.lane.b32.xlu0 %v1834, 32
  %v1933 = vpop.permute.xlu0 %1932
  %v1934 = vsel %vm204, %v1933, 0
  %1936 = vmatprep.subr.mxu0 0.0
  %1937 = vmatpush1.msra.mxu0 0.0
  %1938 = vmatprep.subr.mxu0 0.0
  %1939 = vmatpush1.msra.mxu0 0.0
  %1940 = vmatprep.subr.mxu0 0.0
  %1941 = vmatpush1.msra.mxu0 0.0
  %1942 = vmatprep.subr.mxu0 0.0
  %1943 = vmatpush1.msra.mxu0 0.0
  %1944 = vmatprep.subr.mxu0 0.0
  %1945 = vmatpush1.msra.mxu0 0.0
  %1946 = vmatprep.subr.mxu0 0.0
  %1947 = vmatpush1.msra.mxu0 0.0
  %1948 = vmatprep.subr.mxu0 0.0
  %1949 = vmatpush1.msra.mxu0 0.0
  %1950 = vmatprep.subr.mxu0 0.0
  %1951 = vmatpush1.msra.mxu0 0.0
  %1952 = vmatprep.subr.mxu0 0.0
  %1953 = vmatpush1.msra.mxu0 0.0
  %1954 = vmatprep.subr.mxu0 0.0
  %1955 = vmatpush1.msra.mxu0 0.0
  %1956 = vmatprep.subr.mxu0 0.0
  %1957 = vmatpush1.msra.mxu0 0.0
  %1958 = vmatprep.subr.mxu0 0.0
  %1959 = vmatpush1.msra.mxu0 0.0
  %1960 = vmatprep.subr.mxu0 0.0
  %1961 = vmatpush1.msra.mxu0 %v49
  %1962 = vmatprep.subr.mxu0 0.0
  %1963 = vmatpush1.msra.mxu0 %v48
  %1964 = vmatprep.subr.mxu0 0.0
  %1965 = vmatpush1.msra.mxu0 %v47
  %1966 = vmatprep.subr.mxu0 0.0
  %1967 = vmatpush1.msra.mxu0 %v46
  %1968 = vmatprep.subr.mxu0 0.0
  %1969 = vmatpush2.msra.mxu0 0.0
  %1970 = vmatprep.subr.mxu0 0.0
  %1971 = vmatpush2.msra.mxu0 0.0
  %1972 = vmatprep.subr.mxu0 0.0
  %1973 = vmatpush2.msra.mxu0 0.0
  %1974 = vmatprep.subr.mxu0 0.0
  %1975 = vmatpush2.msra.mxu0 0.0
  %1976 = vmatprep.subr.mxu0 0.0
  %1977 = vmatpush2.msra.mxu0 0.0
  %1978 = vmatprep.subr.mxu0 0.0
  %1979 = vmatpush2.msra.mxu0 0.0
  %1980 = vmatprep.subr.mxu0 0.0
  %1981 = vmatpush2.msra.mxu0 0.0
  %1982 = vmatprep.subr.mxu0 0.0
  %1983 = vmatpush2.msra.mxu0 0.0
  %1984 = vmatprep.subr.mxu0 0.0
  %1985 = vmatpush2.msra.mxu0 0.0
  %1986 = vmatprep.subr.mxu0 0.0
  %1987 = vmatpush2.msra.mxu0 0.0
  %1988 = vmatprep.subr.mxu0 0.0
  %1989 = vmatpush2.msra.mxu0 0.0
  %1990 = vmatprep.subr.mxu0 0.0
  %1991 = vmatpush2.msra.mxu0 0.0
  %1992 = vmatprep.subr.mxu0 0.0
  %1993 = vmatpush2.msra.mxu0 0.0
  %1994 = vmatprep.subr.mxu0 0.0
  %1995 = vmatpush2.msra.mxu0 0.0
  %1996 = vmatprep.subr.mxu0 0.0
  %1997 = vmatpush2.msra.mxu0 0.0
  %1998 = vmatprep.subr.mxu0 0.0
  %1999 = vmatpush2.msra.mxu0 0.0
  %2000 = vmatprep.mubr.f32.mxu0 0.0
  %2001 = vmatmul.mubr.f32.gmra.mxu0 %v1934
  %v2002 = vpop.f32.mrf.mxu0
  %v2003 = vadd.f32 0.0, %v2002
  %v2004 = vpop.f32.mrf.mxu0
  %2005 = vdwg.mxu0
  %2007 = vrot.lane.b32.xlu0 %v1930, 32
  %v2008 = vpop.permute.xlu0 %2007
  %v2009 = vsel %vm204, %v2008, 0
  %2011 = vmatprep.subr.mxu0 0.0
  %2012 = vmatpush1.msra.mxu0 0.0
  %2013 = vmatprep.subr.mxu0 0.0
  %2014 = vmatpush1.msra.mxu0 0.0
  %2015 = vmatprep.subr.mxu0 0.0
  %2016 = vmatpush1.msra.mxu0 0.0
  %2017 = vmatprep.subr.mxu0 0.0
  %2018 = vmatpush1.msra.mxu0 0.0
  %2019 = vmatprep.subr.mxu0 0.0
  %2020 = vmatpush1.msra.mxu0 0.0
  %2021 = vmatprep.subr.mxu0 0.0
  %2022 = vmatpush1.msra.mxu0 0.0
  %2023 = vmatprep.subr.mxu0 0.0
  %2024 = vmatpush1.msra.mxu0 0.0
  %2025 = vmatprep.subr.mxu0 0.0
  %2026 = vmatpush1.msra.mxu0 0.0
  %2027 = vmatprep.subr.mxu0 0.0
  %2028 = vmatpush1.msra.mxu0 0.0
  %2029 = vmatprep.subr.mxu0 0.0
  %2030 = vmatpush1.msra.mxu0 0.0
  %2031 = vmatprep.subr.mxu0 0.0
  %2032 = vmatpush1.msra.mxu0 0.0
  %2033 = vmatprep.subr.mxu0 0.0
  %2034 = vmatpush1.msra.mxu0 0.0
  %2035 = vmatprep.subr.mxu0 0.0
  %2036 = vmatpush1.msra.mxu0 %v45
  %2037 = vmatprep.subr.mxu0 0.0
  %2038 = vmatpush1.msra.mxu0 %v44
  %2039 = vmatprep.subr.mxu0 0.0
  %2040 = vmatpush1.msra.mxu0 %v43
  %2041 = vmatprep.subr.mxu0 0.0
  %2042 = vmatpush1.msra.mxu0 %v42
  %2043 = vmatprep.subr.mxu0 0.0
  %2044 = vmatpush2.msra.mxu0 0.0
  %2045 = vmatprep.subr.mxu0 0.0
  %2046 = vmatpush2.msra.mxu0 0.0
  %2047 = vmatprep.subr.mxu0 0.0
  %2048 = vmatpush2.msra.mxu0 0.0
  %2049 = vmatprep.subr.mxu0 0.0
  %2050 = vmatpush2.msra.mxu0 0.0
  %2051 = vmatprep.subr.mxu0 0.0
  %2052 = vmatpush2.msra.mxu0 0.0
  %2053 = vmatprep.subr.mxu0 0.0
  %2054 = vmatpush2.msra.mxu0 0.0
  %2055 = vmatprep.subr.mxu0 0.0
  %2056 = vmatpush2.msra.mxu0 0.0
  %2057 = vmatprep.subr.mxu0 0.0
  %2058 = vmatpush2.msra.mxu0 0.0
  %2059 = vmatprep.subr.mxu0 0.0
  %2060 = vmatpush2.msra.mxu0 0.0
  %2061 = vmatprep.subr.mxu0 0.0
  %2062 = vmatpush2.msra.mxu0 0.0
  %2063 = vmatprep.subr.mxu0 0.0
  %2064 = vmatpush2.msra.mxu0 0.0
  %2065 = vmatprep.subr.mxu0 0.0
  %2066 = vmatpush2.msra.mxu0 0.0
  %2067 = vmatprep.subr.mxu0 0.0
  %2068 = vmatpush2.msra.mxu0 0.0
  %2069 = vmatprep.subr.mxu0 0.0
  %2070 = vmatpush2.msra.mxu0 0.0
  %2071 = vmatprep.subr.mxu0 0.0
  %2072 = vmatpush2.msra.mxu0 0.0
  %2073 = vmatprep.subr.mxu0 0.0
  %2074 = vmatpush2.msra.mxu0 0.0
  %2075 = vmatprep.mubr.f32.mxu0 0.0
  %2076 = vmatmul.mubr.f32.gmra.mxu0 %v2009
  %v2077 = vpop.f32.mrf.mxu0
  %v2078 = vadd.f32 %v2003, %v2077
  %v2079 = vpop.f32.mrf.mxu0
  %2080 = vdwg.mxu0
  %v2081 = vadd.f32 %v2078, %v202
  %v2082 = vxor.u32 %v2081, 2147483648
  %v2083 = vmul.f32 %v2082, 1.442695
  %v2084 = vpow.pop %v2083
  %v2085 = vadd.f32 %v2084, 1.0
  %v2086 = vrcp.pop %v2085
  %v2087 = vmul.f32 1.0, %v2086
  %v2088 = vmul.f32 %v2087, 2.0
  %v2089 = vsub.f32 %v2088, 1.0
  %v2090 = vmul.f32 %v2087, %v1828
  %2092 = vrot.lane.b32.xlu0 %v2089, 64
  %v2093 = vpop.permute.xlu0 %2092
  %v2095 = vmul.f32 %v2087, %v2093
  %2097 = vrot.lane.b32.xlu0 %v2095, 32
  %v2098 = vpop.permute.xlu0 %2097
  %v2100 = vadd.f32 %v2090, %v2098
  %v2101 = vtanh.pop %v2100
  %2103 = vrot.lane.b32.xlu0 %v2101, 64
  %v2104 = vpop.permute.xlu0 %2103
  %v2106 = vmul.f32 %v2087, %v2104
  %2107 = vmatprep.subr.mxu0 0.0
  %2108 = vmatpush1.msra.mxu0 0.0
  %2109 = vmatprep.subr.mxu0 0.0
  %2110 = vmatpush1.msra.mxu0 0.0
  %2111 = vmatprep.subr.mxu0 0.0
  %2112 = vmatpush1.msra.mxu0 0.0
  %2113 = vmatprep.subr.mxu0 0.0
  %2114 = vmatpush1.msra.mxu0 0.0
  %2115 = vmatprep.subr.mxu0 0.0
  %2116 = vmatpush1.msra.mxu0 0.0
  %2117 = vmatprep.subr.mxu0 0.0
  %2118 = vmatpush1.msra.mxu0 0.0
  %2119 = vmatprep.subr.mxu0 0.0
  %2120 = vmatpush1.msra.mxu0 0.0
  %2121 = vmatprep.subr.mxu0 0.0
  %2122 = vmatpush1.msra.mxu0 0.0
  %2123 = vmatprep.subr.mxu0 0.0
  %2124 = vmatpush1.msra.mxu0 0.0
  %2125 = vmatprep.subr.mxu0 0.0
  %2126 = vmatpush1.msra.mxu0 0.0
  %2127 = vmatprep.subr.mxu0 0.0
  %2128 = vmatpush1.msra.mxu0 0.0
  %2129 = vmatprep.subr.mxu0 0.0
  %2130 = vmatpush1.msra.mxu0 0.0
  %2131 = vmatprep.subr.mxu0 0.0
  %2132 = vmatpush1.msra.mxu0 %v41
  %2133 = vmatprep.subr.mxu0 0.0
  %2134 = vmatpush1.msra.mxu0 %v40
  %2135 = vmatprep.subr.mxu0 0.0
  %2136 = vmatpush1.msra.mxu0 %v39
  %2137 = vmatprep.subr.mxu0 0.0
  %2138 = vmatpush1.msra.mxu0 %v38
  %2139 = vmatprep.subr.mxu0 0.0
  %2140 = vmatpush2.msra.mxu0 0.0
  %2141 = vmatprep.subr.mxu0 0.0
  %2142 = vmatpush2.msra.mxu0 0.0
  %2143 = vmatprep.subr.mxu0 0.0
  %2144 = vmatpush2.msra.mxu0 0.0
  %2145 = vmatprep.subr.mxu0 0.0
  %2146 = vmatpush2.msra.mxu0 0.0
  %2147 = vmatprep.subr.mxu0 0.0
  %2148 = vmatpush2.msra.mxu0 0.0
  %2149 = vmatprep.subr.mxu0 0.0
  %2150 = vmatpush2.msra.mxu0 0.0
  %2151 = vmatprep.subr.mxu0 0.0
  %2152 = vmatpush2.msra.mxu0 0.0
  %2153 = vmatprep.subr.mxu0 0.0
  %2154 = vmatpush2.msra.mxu0 0.0
  %2155 = vmatprep.subr.mxu0 0.0
  %2156 = vmatpush2.msra.mxu0 0.0
  %2157 = vmatprep.subr.mxu0 0.0
  %2158 = vmatpush2.msra.mxu0 0.0
  %2159 = vmatprep.subr.mxu0 0.0
  %2160 = vmatpush2.msra.mxu0 0.0
  %2161 = vmatprep.subr.mxu0 0.0
  %2162 = vmatpush2.msra.mxu0 0.0
  %2163 = vmatprep.subr.mxu0 0.0
  %2164 = vmatpush2.msra.mxu0 0.0
  %2165 = vmatprep.subr.mxu0 0.0
  %2166 = vmatpush2.msra.mxu0 0.0
  %2167 = vmatprep.subr.mxu0 0.0
  %2168 = vmatpush2.msra.mxu0 0.0
  %2169 = vmatprep.subr.mxu0 0.0
  %2170 = vmatpush2.msra.mxu0 0.0
  %2171 = vmatprep.mubr.f32.mxu0 0.0
  %2172 = vmatmul.mubr.f32.gmra.mxu0 %v2009
  %v2173 = vpop.f32.mrf.mxu0
  %v2174 = vadd.f32 0.0, %v2173
  %v2175 = vpop.f32.mrf.mxu0
  %2176 = vdwg.mxu0
  %v2177 = vadd.f32 %v194, %v2174
  %v2178 = vxor.u32 %v2177, 2147483648
  %v2179 = vmul.f32 %v2178, 1.442695
  %v2180 = vpow.pop %v2179
  %v2181 = vadd.f32 %v2180, 1.0
  %v2182 = vrcp.pop %v2181
  %v2183 = vmul.f32 1.0, %v2182
  %v2184 = vmul.f32 %v2183, 2.0
  %v2185 = vsub.f32 %v2184, 1.0
  %v2186 = vmul.f32 %v2183, %v1924
  %2188 = vrot.lane.b32.xlu0 %v2185, 64
  %v2189 = vpop.permute.xlu0 %2188
  %v2191 = vmul.f32 %v2183, %v2189
  %2193 = vrot.lane.b32.xlu0 %v2191, 32
  %v2194 = vpop.permute.xlu0 %2193
  %v2196 = vadd.f32 %v2186, %v2194
  %v2197 = vtanh.pop %v2196
  %2199 = vrot.lane.b32.xlu0 %v2197, 64
  %v2200 = vpop.permute.xlu0 %2199
  %v2202 = vmul.f32 %v2183, %v2200
  %2204 = vrot.lane.b32.xlu0 %v2106, 32
  %v2205 = vpop.permute.xlu0 %2204
  %v2206 = vsel %vm204, %v2205, 0
  %2208 = vmatprep.subr.mxu0 0.0
  %2209 = vmatpush1.msra.mxu0 0.0
  %2210 = vmatprep.subr.mxu0 0.0
  %2211 = vmatpush1.msra.mxu0 0.0
  %2212 = vmatprep.subr.mxu0 0.0
  %2213 = vmatpush1.msra.mxu0 0.0
  %2214 = vmatprep.subr.mxu0 0.0
  %2215 = vmatpush1.msra.mxu0 0.0
  %2216 = vmatprep.subr.mxu0 0.0
  %2217 = vmatpush1.msra.mxu0 0.0
  %2218 = vmatprep.subr.mxu0 0.0
  %2219 = vmatpush1.msra.mxu0 0.0
  %2220 = vmatprep.subr.mxu0 0.0
  %2221 = vmatpush1.msra.mxu0 0.0
  %2222 = vmatprep.subr.mxu0 0.0
  %2223 = vmatpush1.msra.mxu0 0.0
  %2224 = vmatprep.subr.mxu0 0.0
  %2225 = vmatpush1.msra.mxu0 0.0
  %2226 = vmatprep.subr.mxu0 0.0
  %2227 = vmatpush1.msra.mxu0 0.0
  %2228 = vmatprep.subr.mxu0 0.0
  %2229 = vmatpush1.msra.mxu0 0.0
  %2230 = vmatprep.subr.mxu0 0.0
  %2231 = vmatpush1.msra.mxu0 0.0
  %2232 = vmatprep.subr.mxu0 0.0
  %2233 = vmatpush1.msra.mxu0 %v49
  %2234 = vmatprep.subr.mxu0 0.0
  %2235 = vmatpush1.msra.mxu0 %v48
  %2236 = vmatprep.subr.mxu0 0.0
  %2237 = vmatpush1.msra.mxu0 %v47
  %2238 = vmatprep.subr.mxu0 0.0
  %2239 = vmatpush1.msra.mxu0 %v46
  %2240 = vmatprep.subr.mxu0 0.0
  %2241 = vmatpush2.msra.mxu0 0.0
  %2242 = vmatprep.subr.mxu0 0.0
  %2243 = vmatpush2.msra.mxu0 0.0
  %2244 = vmatprep.subr.mxu0 0.0
  %2245 = vmatpush2.msra.mxu0 0.0
  %2246 = vmatprep.subr.mxu0 0.0
  %2247 = vmatpush2.msra.mxu0 0.0
  %2248 = vmatprep.subr.mxu0 0.0
  %2249 = vmatpush2.msra.mxu0 0.0
  %2250 = vmatprep.subr.mxu0 0.0
  %2251 = vmatpush2.msra.mxu0 0.0
  %2252 = vmatprep.subr.mxu0 0.0
  %2253 = vmatpush2.msra.mxu0 0.0
  %2254 = vmatprep.subr.mxu0 0.0
  %2255 = vmatpush2.msra.mxu0 0.0
  %2256 = vmatprep.subr.mxu0 0.0
  %2257 = vmatpush2.msra.mxu0 0.0
  %2258 = vmatprep.subr.mxu0 0.0
  %2259 = vmatpush2.msra.mxu0 0.0
  %2260 = vmatprep.subr.mxu0 0.0
  %2261 = vmatpush2.msra.mxu0 0.0
  %2262 = vmatprep.subr.mxu0 0.0
  %2263 = vmatpush2.msra.mxu0 0.0
  %2264 = vmatprep.subr.mxu0 0.0
  %2265 = vmatpush2.msra.mxu0 0.0
  %2266 = vmatprep.subr.mxu0 0.0
  %2267 = vmatpush2.msra.mxu0 0.0
  %2268 = vmatprep.subr.mxu0 0.0
  %2269 = vmatpush2.msra.mxu0 0.0
  %2270 = vmatprep.subr.mxu0 0.0
  %2271 = vmatpush2.msra.mxu0 0.0
  %2272 = vmatprep.mubr.f32.mxu0 0.0
  %2273 = vmatmul.mubr.f32.gmra.mxu0 %v2206
  %v2274 = vpop.f32.mrf.mxu0
  %v2275 = vadd.f32 0.0, %v2274
  %v2276 = vpop.f32.mrf.mxu0
  %2277 = vdwg.mxu0
  %2279 = vrot.lane.b32.xlu0 %v2202, 32
  %v2280 = vpop.permute.xlu0 %2279
  %v2281 = vsel %vm204, %v2280, 0
  %2283 = vmatprep.subr.mxu0 0.0
  %2284 = vmatpush1.msra.mxu0 0.0
  %2285 = vmatprep.subr.mxu0 0.0
  %2286 = vmatpush1.msra.mxu0 0.0
  %2287 = vmatprep.subr.mxu0 0.0
  %2288 = vmatpush1.msra.mxu0 0.0
  %2289 = vmatprep.subr.mxu0 0.0
  %2290 = vmatpush1.msra.mxu0 0.0
  %2291 = vmatprep.subr.mxu0 0.0
  %2292 = vmatpush1.msra.mxu0 0.0
  %2293 = vmatprep.subr.mxu0 0.0
  %2294 = vmatpush1.msra.mxu0 0.0
  %2295 = vmatprep.subr.mxu0 0.0
  %2296 = vmatpush1.msra.mxu0 0.0
  %2297 = vmatprep.subr.mxu0 0.0
  %2298 = vmatpush1.msra.mxu0 0.0
  %2299 = vmatprep.subr.mxu0 0.0
  %2300 = vmatpush1.msra.mxu0 0.0
  %2301 = vmatprep.subr.mxu0 0.0
  %2302 = vmatpush1.msra.mxu0 0.0
  %2303 = vmatprep.subr.mxu0 0.0
  %2304 = vmatpush1.msra.mxu0 0.0
  %2305 = vmatprep.subr.mxu0 0.0
  %2306 = vmatpush1.msra.mxu0 0.0
  %2307 = vmatprep.subr.mxu0 0.0
  %2308 = vmatpush1.msra.mxu0 %v45
  %2309 = vmatprep.subr.mxu0 0.0
  %2310 = vmatpush1.msra.mxu0 %v44
  %2311 = vmatprep.subr.mxu0 0.0
  %2312 = vmatpush1.msra.mxu0 %v43
  %2313 = vmatprep.subr.mxu0 0.0
  %2314 = vmatpush1.msra.mxu0 %v42
  %2315 = vmatprep.subr.mxu0 0.0
  %2316 = vmatpush2.msra.mxu0 0.0
  %2317 = vmatprep.subr.mxu0 0.0
  %2318 = vmatpush2.msra.mxu0 0.0
  %2319 = vmatprep.subr.mxu0 0.0
  %2320 = vmatpush2.msra.mxu0 0.0
  %2321 = vmatprep.subr.mxu0 0.0
  %2322 = vmatpush2.msra.mxu0 0.0
  %2323 = vmatprep.subr.mxu0 0.0
  %2324 = vmatpush2.msra.mxu0 0.0
  %2325 = vmatprep.subr.mxu0 0.0
  %2326 = vmatpush2.msra.mxu0 0.0
  %2327 = vmatprep.subr.mxu0 0.0
  %2328 = vmatpush2.msra.mxu0 0.0
  %2329 = vmatprep.subr.mxu0 0.0
  %2330 = vmatpush2.msra.mxu0 0.0
  %2331 = vmatprep.subr.mxu0 0.0
  %2332 = vmatpush2.msra.mxu0 0.0
  %2333 = vmatprep.subr.mxu0 0.0
  %2334 = vmatpush2.msra.mxu0 0.0
  %2335 = vmatprep.subr.mxu0 0.0
  %2336 = vmatpush2.msra.mxu0 0.0
  %2337 = vmatprep.subr.mxu0 0.0
  %2338 = vmatpush2.msra.mxu0 0.0
  %2339 = vmatprep.subr.mxu0 0.0
  %2340 = vmatpush2.msra.mxu0 0.0
  %2341 = vmatprep.subr.mxu0 0.0
  %2342 = vmatpush2.msra.mxu0 0.0
  %2343 = vmatprep.subr.mxu0 0.0
  %2344 = vmatpush2.msra.mxu0 0.0
  %2345 = vmatprep.subr.mxu0 0.0
  %2346 = vmatpush2.msra.mxu0 0.0
  %2347 = vmatprep.mubr.f32.mxu0 0.0
  %2348 = vmatmul.mubr.f32.gmra.mxu0 %v2281
  %v2349 = vpop.f32.mrf.mxu0
  %v2350 = vadd.f32 %v2275, %v2349
  %v2351 = vpop.f32.mrf.mxu0
  %2352 = vdwg.mxu0
  %v2353 = vadd.f32 %v2350, %v202
  %v2354 = vxor.u32 %v2353, 2147483648
  %v2355 = vmul.f32 %v2354, 1.442695
  %v2356 = vpow.pop %v2355
  %v2357 = vadd.f32 %v2356, 1.0
  %v2358 = vrcp.pop %v2357
  %v2359 = vmul.f32 1.0, %v2358
  %v2360 = vmul.f32 %v2359, 2.0
  %v2361 = vsub.f32 %v2360, 1.0
  %v2362 = vmul.f32 %v2359, %v2100
  %2364 = vrot.lane.b32.xlu0 %v2361, 64
  %v2365 = vpop.permute.xlu0 %2364
  %v2367 = vmul.f32 %v2359, %v2365
  %2369 = vrot.lane.b32.xlu0 %v2367, 32
  %v2370 = vpop.permute.xlu0 %2369
  %v2372 = vadd.f32 %v2362, %v2370
  %v2373 = vtanh.pop %v2372
  %2375 = vrot.lane.b32.xlu0 %v2373, 64
  %v2376 = vpop.permute.xlu0 %2375
  %v2378 = vmul.f32 %v2359, %v2376
  %v2379 = vld [vmem:[%s7] sm:$0x1]
  %v2381 = vlaneseq
  %v2382 = vshrl.u32 %v2381, 7
  %v2383 = vsub.s32 0, %v2382
  %v2384 = vrot.slane %v2379, %v2383
  %2385 = vrot.lane.b32.xlu0 %v2384, 96
  %v2386 = vpop.permute.xlu0 %2385
  %v2388 = vmul.f32 %v2378, %v2386
  %v2389 = vld [vmem:[%s8] sm:$0x1]
  %v2391 = vlaneseq
  %v2392 = vshrl.u32 %v2391, 7
  %v2393 = vsub.s32 0, %v2392
  %v2394 = vrot.slane %v2389, %v2393
  %2395 = vrot.lane.b32.xlu0 %v2394, 96
  %v2396 = vpop.permute.xlu0 %2395
  %v2398 = vadd.f32 %v2388, %v2396
  %v2399 = vld [vmem:[%s9] sm:$0xff]
  %v2400 = vld [vmem:[%s9 + $0x8] sm:$0xff]
  %v2401 = vld [vmem:[%s9 + $0x10] sm:$0xff]
  %v2402 = vld [vmem:[%s9 + $0x18] sm:$0xff]
  %v2403 = vld [vmem:[%s10] sm:$0x1]
  %v2405 = vlaneseq
  %v2406 = vshrl.u32 %v2405, 7
  %v2407 = vsub.s32 0, %v2406
  %v2408 = vrot.slane %v2403, %v2407
  %2411 = vrot.lane.b32.xlu0 %v2398, 32
  %v2412 = vpop.permute.xlu0 %2411
  %v2413 = vsel %vm204, %v2412, 0
  %2415 = vmatprep.subr.mxu0 0.0
  %2416 = vmatpush1.msra.mxu0 0.0
  %2417 = vmatprep.subr.mxu0 0.0
  %2418 = vmatpush1.msra.mxu0 0.0
  %2419 = vmatprep.subr.mxu0 0.0
  %2420 = vmatpush1.msra.mxu0 0.0
  %2421 = vmatprep.subr.mxu0 0.0
  %2422 = vmatpush1.msra.mxu0 0.0
  %2423 = vmatprep.subr.mxu0 0.0
  %2424 = vmatpush1.msra.mxu0 0.0
  %2425 = vmatprep.subr.mxu0 0.0
  %2426 = vmatpush1.msra.mxu0 0.0
  %2427 = vmatprep.subr.mxu0 0.0
  %2428 = vmatpush1.msra.mxu0 0.0
  %2429 = vmatprep.subr.mxu0 0.0
  %2430 = vmatpush1.msra.mxu0 0.0
  %2431 = vmatprep.subr.mxu0 0.0
  %2432 = vmatpush1.msra.mxu0 0.0
  %2433 = vmatprep.subr.mxu0 0.0
  %2434 = vmatpush1.msra.mxu0 0.0
  %2435 = vmatprep.subr.mxu0 0.0
  %2436 = vmatpush1.msra.mxu0 0.0
  %2437 = vmatprep.subr.mxu0 0.0
  %2438 = vmatpush1.msra.mxu0 0.0
  %2439 = vmatprep.subr.mxu0 0.0
  %2440 = vmatpush1.msra.mxu0 %v2402
  %2441 = vmatprep.subr.mxu0 0.0
  %2442 = vmatpush1.msra.mxu0 %v2401
  %2443 = vmatprep.subr.mxu0 0.0
  %2444 = vmatpush1.msra.mxu0 %v2400
  %2445 = vmatprep.subr.mxu0 0.0
  %2446 = vmatpush1.msra.mxu0 %v2399
  %2447 = vmatprep.subr.mxu0 0.0
  %2448 = vmatpush2.msra.mxu0 0.0
  %2449 = vmatprep.subr.mxu0 0.0
  %2450 = vmatpush2.msra.mxu0 0.0
  %2451 = vmatprep.subr.mxu0 0.0
  %2452 = vmatpush2.msra.mxu0 0.0
  %2453 = vmatprep.subr.mxu0 0.0
  %2454 = vmatpush2.msra.mxu0 0.0
  %2455 = vmatprep.subr.mxu0 0.0
  %2456 = vmatpush2.msra.mxu0 0.0
  %2457 = vmatprep.subr.mxu0 0.0
  %2458 = vmatpush2.msra.mxu0 0.0
  %2459 = vmatprep.subr.mxu0 0.0
  %2460 = vmatpush2.msra.mxu0 0.0
  %2461 = vmatprep.subr.mxu0 0.0
  %2462 = vmatpush2.msra.mxu0 0.0
  %2463 = vmatprep.subr.mxu0 0.0
  %2464 = vmatpush2.msra.mxu0 0.0
  %2465 = vmatprep.subr.mxu0 0.0
  %2466 = vmatpush2.msra.mxu0 0.0
  %2467 = vmatprep.subr.mxu0 0.0
  %2468 = vmatpush2.msra.mxu0 0.0
  %2469 = vmatprep.subr.mxu0 0.0
  %2470 = vmatpush2.msra.mxu0 0.0
  %2471 = vmatprep.subr.mxu0 0.0
  %2472 = vmatpush2.msra.mxu0 0.0
  %2473 = vmatprep.subr.mxu0 0.0
  %2474 = vmatpush2.msra.mxu0 0.0
  %2475 = vmatprep.subr.mxu0 0.0
  %2476 = vmatpush2.msra.mxu0 0.0
  %2477 = vmatprep.subr.mxu0 0.0
  %2478 = vmatpush2.msra.mxu0 0.0
  %2479 = vmatprep.mubr.f32.mxu0 0.0
  %2480 = vmatmul.mubr.f32.gmra.mxu0 %v2413
  %v2481 = vpop.f32.mrf.mxu0
  %v2482 = vadd.f32 %v2408, %v2481
  %v2483 = vpop.f32.mrf.mxu0
  %2484 = vdwg.mxu0
  %2485 = vst [vmem:[%s11] sm:$0xff] %v2482
  // Predicated region
  $region46: #{multi_output_lstm_forward.1} parent=0 // pred_check
    _
  $region47: #{multi_output_lstm_forward.1} parent=0 // pred_check_branch
    %2487 = sbr.rel (0) target = $region49
  $region48: #{multi_output_lstm_forward.1} parent=0 // pred_region
    _
  $region49: #{multi_output_lstm_forward.1} parent=0 // pred_fallthru
    _
  // Predicated region
  $region50: #{multi_output_lstm_forward.1} parent=0 // pred_check
    _
  $region51: #{multi_output_lstm_forward.1} parent=0 // pred_check_branch
    %2489 = sbr.rel (0) target = $region53
  $region52: #{multi_output_lstm_forward.1} parent=0 // pred_region
    _
  $region53: #{multi_output_lstm_forward.1} parent=0 // pred_fallthru
    _

</llo_original>
